<compile_context>
chip_gen: v7x
topology: tpu7x:2x2x1
jax: 0.10.0
libtpu: 0.0.40
codegen_flags: <defaults>
</compile_context>

<pallas_src>
import jax
import jax.numpy as jnp
from jax.experimental import pallas as pl
from jax.experimental.pallas import tpu as pltpu

INPUT_DIM = 784
HIDDEN_DIM = 512
LATENT_DIM = 64
OUT_DIM = 2 * LATENT_DIM    # fused [mu | logvar] output, 128 lanes wide
LEAKY_SLOPE = 0.01          # F.leaky_relu default negative_slope


def _round_up(n, m):
    return ((n + m - 1) // m) * m


def _pick_tile(B, *, tm_max=1024, min_steps=2):
    """Batch-tile rows: multiple of 16 (bf16 sublane packing), <= tm_max, and
    small enough that the grid has >= min_steps steps when B allows it (so the
    "parallel" axis shards work onto both v7x TensorCores)."""
    if B <= 16:
        return _round_up(B, 8)            # tiny batch: one aligned block
    tm = _round_up(pl.cdiv(B, min_steps), 16)
    return max(16, min(tm, tm_max, _round_up(B, 16)))


def encoder_kernel(x_ref, w1_ref, b1_ref, w23_ref, b23_ref, out_ref):
    # x arrives straight from HBM as f32; cast to bf16 just before the MXU.
    x = x_ref[...].astype(jnp.bfloat16)

    # fc1: bf16 MXU matmul with f32 accumulation; bias + leaky_relu in f32 (VPU).
    h = jnp.dot(x, w1_ref[...], preferred_element_type=jnp.float32)
    h = h + b1_ref[...]
    h = jnp.where(h > 0, h, LEAKY_SLOPE * h)

    # Fused fc2|fc3: one 128-wide matmul -> lane-dense, unmasked output store.
    out = jnp.dot(h.astype(jnp.bfloat16), w23_ref[...],
                  preferred_element_type=jnp.float32) + b23_ref[...]
    out_ref[...] = out.astype(out_ref.dtype)


def encoder_forward(x, w1, b1, w23, b23, *, tm_max=1024):
    """x: [B, INPUT_DIM] f32. Returns (mu, logvar), each [B, LATENT_DIM] f32."""
    B = x.shape[0]
    tm = _pick_tile(B, tm_max=tm_max)

    out = pl.pallas_call(
        encoder_kernel,
        out_shape=jax.ShapeDtypeStruct((B, OUT_DIM), jnp.float32),
        grid=(pl.cdiv(B, tm),),
        in_specs=[
            pl.BlockSpec((tm, INPUT_DIM), lambda i: (i, 0)),          # x tile (pipelined, f32)
            pl.BlockSpec((INPUT_DIM, HIDDEN_DIM), lambda i: (0, 0)),  # w1 (bf16, VMEM-resident)
            pl.BlockSpec((1, HIDDEN_DIM), lambda i: (0, 0)),          # b1 (f32)
            pl.BlockSpec((HIDDEN_DIM, OUT_DIM), lambda i: (0, 0)),    # w2|w3 fused (bf16)
            pl.BlockSpec((1, OUT_DIM), lambda i: (0, 0)),             # b2|b3 fused (f32)
        ],
        out_specs=pl.BlockSpec((tm, OUT_DIM), lambda i: (i, 0)),
        compiler_params=pltpu.CompilerParams(
            dimension_semantics=("parallel",)),
    )(x, w1, b1, w23, b23)

    # Lazy slices of the fused lane-dense buffer; under jit these fuse into
    # the consumers rather than paying a second HBM pass.
    mu = out[:, :LATENT_DIM]
    logvar = out[:, LATENT_DIM:]
    return mu, logvar


def init_params(key):
    """Deterministic f32 parameter init (PyTorch-Linear-like uniform bounds)."""
    ks = jax.random.split(key, 6)

    def linear(kw, kb, fan_in, fan_out):
        bound = 1.0 / jnp.sqrt(fan_in)
        w = jax.random.uniform(kw, (fan_in, fan_out), jnp.float32, -bound, bound)
        b = jax.random.uniform(kb, (1, fan_out), jnp.float32, -bound, bound)
        return w, b

    w1, b1 = linear(ks[0], ks[1], INPUT_DIM, HIDDEN_DIM)
    w2, b2 = linear(ks[2], ks[3], HIDDEN_DIM, LATENT_DIM)
    w3, b3 = linear(ks[4], ks[5], HIDDEN_DIM, LATENT_DIM)
    return w1, b1, w2, b2, w3, b3


def prepare_params(w1, b1, w2, b2, w3, b3):
    """Pack params for the kernel: bf16 weights, fc2/fc3 fused on the lane dim."""
    w1k = w1.astype(jnp.bfloat16)                                  # [784, 512]
    w23 = jnp.concatenate([w2, w3], axis=1).astype(jnp.bfloat16)   # [512, 128]
    b23 = jnp.concatenate([b2, b3], axis=1)                        # [1, 128] f32
    return w1k, b1, w23, b23


if __name__ == "__main__":
    key = jax.random.PRNGKey(0)
    k_x, k_p = jax.random.split(key)

    # Small batch that still exercises a 2-step grid with a partial last block.
    B = 48
    x = jax.random.normal(k_x, (B, INPUT_DIM), dtype=jnp.float32)
    raw = init_params(k_p)
    packed = prepare_params(*raw)

    mu, logvar = jax.jit(encoder_forward)(x, *packed)
    jax.block_until_ready((mu, logvar))

    w1, b1, w2, b2, w3, b3 = raw

    # (a) True f32 reference: the PyTorch module's math.
    h32 = jnp.dot(x, w1) + b1
    h32 = jnp.where(h32 > 0, h32, LEAKY_SLOPE * h32)
    mu32 = jnp.dot(h32, w2) + b2
    lv32 = jnp.dot(h32, w3) + b3

    # (b) bf16-quantized reference matching the kernel's MXU operand precision.
    xb = x.astype(jnp.bfloat16)
    hb = jnp.dot(xb, w1.astype(jnp.bfloat16),
                 preferred_element_type=jnp.float32) + b1
    hb = jnp.where(hb > 0, hb, LEAKY_SLOPE * hb)
    hbb = hb.astype(jnp.bfloat16)
    mub = jnp.dot(hbb, w2.astype(jnp.bfloat16),
                  preferred_element_type=jnp.float32) + b2
    lvb = jnp.dot(hbb, w3.astype(jnp.bfloat16),
                  preferred_element_type=jnp.float32) + b3

    assert mu.shape == (B, LATENT_DIM) and logvar.shape == (B, LATENT_DIM)
    assert jnp.allclose(mu, mub, atol=1e-2, rtol=1e-2)
    assert jnp.allclose(logvar, lvb, atol=1e-2, rtol=1e-2)
    assert jnp.allclose(mu, mu32, atol=5e-2, rtol=5e-2)
    assert jnp.allclose(logvar, lv32, atol=5e-2, rtol=5e-2)

    print("KERNEL_OK")
</pallas_src>

<mosaic_0001>
module attributes {stable_mosaic.version = 11 : i64} {
  func.func @encoder_kernel(%arg0: i32, %arg1: memref<32x784xf32, #tpu.memory_space<vmem>>, %arg2: memref<784x512xbf16, #tpu.memory_space<vmem>>, %arg3: memref<1x512xf32, #tpu.memory_space<vmem>>, %arg4: memref<512x128xbf16, #tpu.memory_space<vmem>>, %arg5: memref<1x128xf32, #tpu.memory_space<vmem>>, %arg6: memref<32x128xf32, #tpu.memory_space<vmem>>) attributes {dimension_semantics = [#tpu.dimension_semantics<parallel>], iteration_bounds = array<i64: 2>, scalar_prefetch = 0 : i64, scratch_operands = 0 : i64, tpu.core_type = #tpu.core_type<tc>, window_params = [{transform_indices = @transform_0, window_bounds = array<i64: 32, 784>}, {pipeline_mode = #tpu.pipeline_mode<synchronous>, transform_indices = @transform_1, window_bounds = array<i64: 784, 512>}, {pipeline_mode = #tpu.pipeline_mode<synchronous>, transform_indices = @transform_2, window_bounds = array<i64: 1, 512>}, {pipeline_mode = #tpu.pipeline_mode<synchronous>, transform_indices = @transform_3, window_bounds = array<i64: 512, 128>}, {pipeline_mode = #tpu.pipeline_mode<synchronous>, transform_indices = @transform_4, window_bounds = array<i64: 1, 128>}, {transform_indices = @transform_5, window_bounds = array<i64: 32, 128>}]} {
    %c0 = arith.constant 0 : index
    %c0_0 = arith.constant 0 : index
    %0 = vector.load %arg1[%c0, %c0_0] : memref<32x784xf32, #tpu.memory_space<vmem>>, vector<32x784xf32>
    %1 = arith.truncf %0 : vector<32x784xf32> to vector<32x784xbf16>
    %c0_1 = arith.constant 0 : index
    %c0_2 = arith.constant 0 : index
    %2 = vector.load %arg2[%c0_1, %c0_2] : memref<784x512xbf16, #tpu.memory_space<vmem>>, vector<784x512xbf16>
    %cst = arith.constant dense<0.000000e+00> : vector<32x512xf32>
    %3 = tpu.matmul %1, %2, %cst {dimension_numbers = #tpu.dot_dimension_numbers<[1], [0], [0], [1], [0, 0, 1, 1], [], []>} : vector<32x784xbf16>, vector<784x512xbf16>, vector<32x512xf32> -> vector<32x512xf32>
    %c0_3 = arith.constant 0 : index
    %c0_4 = arith.constant 0 : index
    %4 = vector.load %arg3[%c0_3, %c0_4] : memref<1x512xf32, #tpu.memory_space<vmem>>, vector<1x512xf32>
    %5 = vector.broadcast %4 : vector<1x512xf32> to vector<32x512xf32>
    %6 = arith.addf %3, %5 : vector<32x512xf32>
    %cst_5 = arith.constant 0.000000e+00 : f32
    %7 = vector.broadcast %cst_5 : f32 to vector<32x512xf32>
    %8 = arith.cmpf ogt, %6, %7 : vector<32x512xf32>
    %cst_6 = arith.constant 0.00999999977 : f32
    %9 = vector.broadcast %cst_6 : f32 to vector<32x512xf32>
    %10 = arith.mulf %9, %6 : vector<32x512xf32>
    %11 = arith.select %8, %6, %10 : vector<32x512xi1>, vector<32x512xf32>
    %12 = arith.truncf %11 : vector<32x512xf32> to vector<32x512xbf16>
    %c0_7 = arith.constant 0 : index
    %c0_8 = arith.constant 0 : index
    %13 = vector.load %arg4[%c0_7, %c0_8] : memref<512x128xbf16, #tpu.memory_space<vmem>>, vector<512x128xbf16>
    %cst_9 = arith.constant dense<0.000000e+00> : vector<32x128xf32>
    %14 = tpu.matmul %12, %13, %cst_9 {dimension_numbers = #tpu.dot_dimension_numbers<[1], [0], [0], [1], [0, 0, 1, 1], [], []>} : vector<32x512xbf16>, vector<512x128xbf16>, vector<32x128xf32> -> vector<32x128xf32>
    %c0_10 = arith.constant 0 : index
    %c0_11 = arith.constant 0 : index
    %15 = vector.load %arg5[%c0_10, %c0_11] : memref<1x128xf32, #tpu.memory_space<vmem>>, vector<1x128xf32>
    %16 = vector.broadcast %15 : vector<1x128xf32> to vector<32x128xf32>
    %17 = arith.addf %14, %16 : vector<32x128xf32>
    %c0_12 = arith.constant 0 : index
    %c0_13 = arith.constant 0 : index
    %18 = vector.load %arg6[%c0_12, %c0_13] : memref<32x128xf32, #tpu.memory_space<vmem>>, vector<32x128xf32>
    tpu.vector_store %arg6[%c0_12, %c0_13], %17 {strides = array<i32>} : memref<32x128xf32, #tpu.memory_space<vmem>>, vector<32x128xf32>,
    return
  }
  func.func @transform_0(%arg0: i32) -> (i32, i32) {
    %c0_i32 = arith.constant 0 : i32
    %c0_i32_0 = arith.constant 0 : i32
    return %arg0, %c0_i32 : i32, i32
  }
  func.func @transform_1(%arg0: i32) -> (i32, i32) {
    %c0_i32 = arith.constant 0 : i32
    %c0_i32_0 = arith.constant 0 : i32
    %c0_i32_1 = arith.constant 0 : i32
    return %c0_i32, %c0_i32_0 : i32, i32
  }
  func.func @transform_2(%arg0: i32) -> (i32, i32) {
    %c0_i32 = arith.constant 0 : i32
    %c0_i32_0 = arith.constant 0 : i32
    %c0_i32_1 = arith.constant 0 : i32
    return %c0_i32, %c0_i32_0 : i32, i32
  }
  func.func @transform_3(%arg0: i32) -> (i32, i32) {
    %c0_i32 = arith.constant 0 : i32
    %c0_i32_0 = arith.constant 0 : i32
    %c0_i32_1 = arith.constant 0 : i32
    return %c0_i32, %c0_i32_0 : i32, i32
  }
  func.func @transform_4(%arg0: i32) -> (i32, i32) {
    %c0_i32 = arith.constant 0 : i32
    %c0_i32_0 = arith.constant 0 : i32
    %c0_i32_1 = arith.constant 0 : i32
    return %c0_i32, %c0_i32_0 : i32, i32
  }
  func.func @transform_5(%arg0: i32) -> (i32, i32) {
    %c0_i32 = arith.constant 0 : i32
    %c0_i32_0 = arith.constant 0 : i32
    return %arg0, %c0_i32 : i32, i32
  }
}

</mosaic_0001>

<llo_original>
// kernel: encoder_forward.1
$region0: #{encoder_forward.1}
  #allocation0 [shape = 'u32[]', space=smem, size = 0x4, offset = 0x4, fixed_abs, tag = 'smem constant byte address 0x4 - core index']
  #allocation1 [shape = 'u32[144,128]{1,0:T(1,128)}', space=vmem, size = 0x12000, scoped, tag = 'internal scratch']
  %s0 = inlined_call_operand.hbm [shape: f32[48,784], index: 0, kind: input, shape index: {}]
  %s1 = inlined_call_operand.hbm [shape: bf16[784,512], index: 1, kind: input, shape index: {}]
  %s2 = inlined_call_operand.vmem [shape: f32[1,512], index: 2, kind: input, shape index: {}]
  %s3 = inlined_call_operand.hbm [shape: bf16[512,128], index: 3, kind: input, shape index: {}]
  %s4 = inlined_call_operand.vmem [shape: f32[1,128], index: 4, kind: input, shape index: {}]
  %s5 = inlined_call_operand.vmem [shape: f32[48,128], index: 5, kind: output, shape index: {}]
  %s6 = sld [smem:[#allocation0]]
  $region113: #{encoder_forward.1} parent=0
    _
  %s8 = ssub.s32 1, %s6
  %s9 = scalar_select 0, %s8, %s6
  $region1: #{encoder_forward.1} parent=0
    #allocation2 [shape = 'u8[229376]{0}', space=vmem, size = 0x38000, scoped, tag = 'input window, operand 0']
    #allocation3 [shape = 's32[2]{0}', space=sflag, size = 0x8, scoped, tag = 'scoped memory for encoder_forward.1']
    #allocation4 [shape = 'u8[802816]{0}', space=vmem, size = 0xc4000, scoped, tag = 'input window, operand 1, single buffered']
    #allocation5 [shape = 's32[1]{0}', space=sflag, size = 0x4, scoped, tag = 'scoped memory for encoder_forward.1']
    #allocation6 [shape = 'u8[131072]{0}', space=vmem, size = 0x20000, scoped, tag = 'input window, operand 3, single buffered']
    #allocation7 [shape = 'u8[32768]{0}', space=vmem, size = 0x8000, scoped, tag = 'output window, operand 0']
    %10 = vsyncpa [#allocation3], 0
    %s11 = scalar_lea.sflag [#allocation3], 1
    %12 = vsyncpa %s11, 0
    %13 = vsyncpa [#allocation5], 0
    loop: start=0, step=1, limit=4
    $region2: #{encoder_forward.1} parent=1 // loop_pre_header
      _
    $region3: #{encoder_forward.1} parent=1 // loop_header
      %s15 = sphi 0, %s19
      %p16 = scmp.ge.s32.totalorder %s15, 4
      %s25 = sphi 0, %s27
      %s28 = sphi 0, %s25
      %s29 = sphi 0, %s28
      %s45 = sphi 0, %s29
      %s49 = sphi 0, %s49
      %s51 = sphi 0, %s49
      %s52 = sphi 0, %s51
      %s66 = sphi 0, %s52
      %s70 = sphi 0, %s70
      %s72 = sphi 0, %s70
      %s73 = sphi 0, %s72
      %s87 = sphi 0, %s73
      %s91 = sphi 0, %s91
      %s93 = sphi 0, %s91
      %s94 = sphi 0, %s93
      %s108 = sphi 0, %s94
      %s112 = sphi 0, %s112
      %s114 = sphi 0, %s112
      %s115 = sphi 0, %s114
      %s129 = sphi 0, %s115
      %s135 = sphi 0, %s137
      %s138 = sphi 0, %s135
      %s139 = sphi 0, %s138
      %s155 = sphi 0, %s139
    $region4: #{encoder_forward.1} parent=1 // loop_header_branch
      %18 = sbr.rel (%p16) target = $region8
    $region5: #{encoder_forward.1} parent=1 // loop_body
      %s20 = ssub.s32 %s15, 1
      %s21 = ssub.s32 %s15, 2
      %s22 = sadd.s32 %s15, 1
      %s23 = ssub.s32 %s15, %s22
      %p24 = scmp.eq.s32.totalorder %s23, 0
      %s26 = sadd.s32 %s25, 1
      %s27 = scalar_select %p24, %s25, %s26
      %p30 = pneg %p24
      %p31 = scmp.eq.s32.totalorder %s15, 1
      %p32 = por %p30, %p31
      %p33 = scmp.ne.s32.totalorder %s25, %s28
      %p34 = scmp.eq.s32.totalorder %s15, 0
      %p35 = por %p33, %p34
      %p36 = scmp.ne.s32.totalorder %s25, %s28
      %p37 = scmp.eq.s32.totalorder %s20, 1
      %p38 = por %p36, %p37
      %p39 = scmp.ne.s32.totalorder %s28, %s29
      %p40 = scmp.eq.s32.totalorder %s20, 0
      %p41 = por %p39, %p40
      %p42 = scmp.ne.s32.totalorder %s28, %s29
      %p43 = scmp.eq.s32.totalorder %s21, 1
      %p44 = por %p42, %p43
      %p46 = scmp.ne.s32.totalorder %s29, %s45
      %p47 = scmp.eq.s32.totalorder %s21, 0
      %p48 = por %p46, %p47
      %s50 = sadd.s32 %s49, 1
      %p53 = scmp.eq.s32.totalorder %s15, 1
      %p54 = scmp.ne.s32.totalorder %s49, %s51
      %p55 = scmp.eq.s32.totalorder %s15, 0
      %p56 = por %p54, %p55
      %p57 = scmp.ne.s32.totalorder %s49, %s51
      %p58 = scmp.eq.s32.totalorder %s20, 1
      %p59 = por %p57, %p58
      %p60 = scmp.ne.s32.totalorder %s51, %s52
      %p61 = scmp.eq.s32.totalorder %s20, 0
      %p62 = por %p60, %p61
      %p63 = scmp.ne.s32.totalorder %s51, %s52
      %p64 = scmp.eq.s32.totalorder %s21, 1
      %p65 = por %p63, %p64
      %p67 = scmp.ne.s32.totalorder %s52, %s66
      %p68 = scmp.eq.s32.totalorder %s21, 0
      %p69 = por %p67, %p68
      %s71 = sadd.s32 %s70, 1
      %p74 = scmp.eq.s32.totalorder %s15, 1
      %p75 = scmp.ne.s32.totalorder %s70, %s72
      %p76 = scmp.eq.s32.totalorder %s15, 0
      %p77 = por %p75, %p76
      %p78 = scmp.ne.s32.totalorder %s70, %s72
      %p79 = scmp.eq.s32.totalorder %s20, 1
      %p80 = por %p78, %p79
      %p81 = scmp.ne.s32.totalorder %s72, %s73
      %p82 = scmp.eq.s32.totalorder %s20, 0
      %p83 = por %p81, %p82
      %p84 = scmp.ne.s32.totalorder %s72, %s73
      %p85 = scmp.eq.s32.totalorder %s21, 1
      %p86 = por %p84, %p85
      %p88 = scmp.ne.s32.totalorder %s73, %s87
      %p89 = scmp.eq.s32.totalorder %s21, 0
      %p90 = por %p88, %p89
      %s92 = sadd.s32 %s91, 1
      %p95 = scmp.eq.s32.totalorder %s15, 1
      %p96 = scmp.ne.s32.totalorder %s91, %s93
      %p97 = scmp.eq.s32.totalorder %s15, 0
      %p98 = por %p96, %p97
      %p99 = scmp.ne.s32.totalorder %s91, %s93
      %p100 = scmp.eq.s32.totalorder %s20, 1
      %p101 = por %p99, %p100
      %p102 = scmp.ne.s32.totalorder %s93, %s94
      %p103 = scmp.eq.s32.totalorder %s20, 0
      %p104 = por %p102, %p103
      %p105 = scmp.ne.s32.totalorder %s93, %s94
      %p106 = scmp.eq.s32.totalorder %s21, 1
      %p107 = por %p105, %p106
      %p109 = scmp.ne.s32.totalorder %s94, %s108
      %p110 = scmp.eq.s32.totalorder %s21, 0
      %p111 = por %p109, %p110
      %s113 = sadd.s32 %s112, 1
      %p116 = scmp.eq.s32.totalorder %s15, 1
      %p117 = scmp.ne.s32.totalorder %s112, %s114
      %p118 = scmp.eq.s32.totalorder %s15, 0
      %p119 = por %p117, %p118
      %p120 = scmp.ne.s32.totalorder %s112, %s114
      %p121 = scmp.eq.s32.totalorder %s20, 1
      %p122 = por %p120, %p121
      %p123 = scmp.ne.s32.totalorder %s114, %s115
      %p124 = scmp.eq.s32.totalorder %s20, 0
      %p125 = por %p123, %p124
      %p126 = scmp.ne.s32.totalorder %s114, %s115
      %p127 = scmp.eq.s32.totalorder %s21, 1
      %p128 = por %p126, %p127
      %p130 = scmp.ne.s32.totalorder %s115, %s129
      %p131 = scmp.eq.s32.totalorder %s21, 0
      %p132 = por %p130, %p131
      %s133 = ssub.s32 %s15, %s22
      %p134 = scmp.eq.s32.totalorder %s133, 0
      %s136 = sadd.s32 %s135, 1
      %s137 = scalar_select %p134, %s135, %s136
      %p140 = pneg %p134
      %p141 = scmp.eq.s32.totalorder %s15, 1
      %p142 = por %p140, %p141
      %p143 = scmp.ne.s32.totalorder %s135, %s138
      %p144 = scmp.eq.s32.totalorder %s15, 0
      %p145 = por %p143, %p144
      %p146 = scmp.ne.s32.totalorder %s135, %s138
      %p147 = scmp.eq.s32.totalorder %s20, 1
      %p148 = por %p146, %p147
      %p149 = scmp.ne.s32.totalorder %s138, %s139
      %p150 = scmp.eq.s32.totalorder %s20, 0
      %p151 = por %p149, %p150
      %p152 = scmp.ne.s32.totalorder %s138, %s139
      %p153 = scmp.eq.s32.totalorder %s21, 1
      %p154 = por %p152, %p153
      %p156 = scmp.ne.s32.totalorder %s139, %s155
      %p157 = scmp.eq.s32.totalorder %s21, 0
      %p158 = por %p156, %p157
      %p159 = scmp.le.s32.totalorder 1, %s15
      %p160 = scmp.lt.s32.totalorder %s15, 3
      %p161 = pnand %p159, %p160
      %p162 = pneg %p161
      // Predicated region
      $region9: #{encoder_forward.1} parent=5 // pred_check
        _
      $region10: #{encoder_forward.1} parent=5 // pred_check_branch
        %164 = sbr.rel (%p161) target = $region12
      $region11: #{encoder_forward.1} parent=5 // pred_region
        %s165 = ssub.s32 %s15, 1
        // Predicated region
        $region13: #{encoder_forward.1} parent=11 // pred_check
          %p166 = pneg %p62
        $region14: #{encoder_forward.1} parent=11 // pred_check_branch
          %168 = sbr.rel (%p166) target = $region16
        $region15: #{encoder_forward.1} parent=11 // pred_region
          %s170 = ssub.s32 25088, 25088
          %171 = vsyncadd [#allocation5], %s170
          %s172 = sshll.u32 [#allocation4], 4
          %s173 = int_to_ptr.vmem [resolvable:$true] %s172
          %178 = dma.hbm_to_vmem [thread:$0]  %s1, 25088, %s173, [#allocation5], 256, 256, 16
        $region16: #{encoder_forward.1} parent=11 // pred_fallthru
          _
        // Predicated region
        $region17: #{encoder_forward.1} parent=11 // pred_check
          %p179 = pneg %p83
        $region18: #{encoder_forward.1} parent=11 // pred_check_branch
          %181 = sbr.rel (%p179) target = $region20
        $region19: #{encoder_forward.1} parent=11 // pred_region
          _
        $region20: #{encoder_forward.1} parent=11 // pred_fallthru
          _
        // Predicated region
        $region21: #{encoder_forward.1} parent=11 // pred_check
          %p182 = pneg %p104
        $region22: #{encoder_forward.1} parent=11 // pred_check_branch
          %184 = sbr.rel (%p182) target = $region24
        $region23: #{encoder_forward.1} parent=11 // pred_region
          %s186 = ssub.s32 4096, 4096
          %187 = vsyncadd [#allocation5], %s186
          %s188 = sshll.u32 [#allocation6], 4
          %s189 = int_to_ptr.vmem [resolvable:$true] %s188
          %194 = dma.hbm_to_vmem [thread:$0]  %s3, 4096, %s189, [#allocation5], 64, 64, 4
        $region24: #{encoder_forward.1} parent=11 // pred_fallthru
          _
        // Predicated region
        $region25: #{encoder_forward.1} parent=11 // pred_check
          %p195 = pneg %p125
        $region26: #{encoder_forward.1} parent=11 // pred_check_branch
          %197 = sbr.rel (%p195) target = $region28
        $region27: #{encoder_forward.1} parent=11 // pred_region
          _
        $region28: #{encoder_forward.1} parent=11 // pred_fallthru
          _
      $region12: #{encoder_forward.1} parent=5 // pred_fallthru
        _
      %p198 = scmp.lt.s32.totalorder %s15, 2
      // Predicated region
      $region29: #{encoder_forward.1} parent=5 // pred_check
        %p199 = pneg %p198
      $region30: #{encoder_forward.1} parent=5 // pred_check_branch
        %201 = sbr.rel (%p199) target = $region32
      $region31: #{encoder_forward.1} parent=5 // pred_region
        // Predicated region
        $region33: #{encoder_forward.1} parent=31 // pred_check
          %p202 = pneg %p35
        $region34: #{encoder_forward.1} parent=31 // pred_check_branch
          %204 = sbr.rel (%p202) target = $region36
        $region35: #{encoder_forward.1} parent=31 // pred_region
          %s205 = sand.u32 %s25, 1
          %s206 = scalar_lea.sflag [#allocation3], %s205
          %s207 = sand.u32 %s25, 1
          %s208 = smul.addr %s207, 224
          %s209 = scalar_lea.vmem [#allocation2], %s208
          %s210 = smul.u32 4, %s15
          %s211 = ssub.s32 6, %s210
          %p212 = scmp.lt.s32.totalorder %s211, 4
          %s213 = scalar_select %p212, %s211, 4
          %s214 = smul.u32 128, %s213
          %s215 = smul.u32 %s214, 7
          %s217 = ssub.s32 3584, %s215
          %218 = vsyncadd %s206, %s217
          %p219 = scmp.ne.s32.totalorder 0, %s215
          %s220 = smul.addr %s210, 7
          %s221 = smul.addr %s220, 128
          %s222 = scalar_lea.hbm %s0, %s221
          %s223 = smul.u32 56, %s213
          %s224 = sshll.u32 %s209, 4
          %s225 = int_to_ptr.vmem [resolvable:$true] %s224
          %s226 = sshll.u32 %s223, 4
          %230 = dma.hbm_to_vmem [thread:$0]  (%p219), %s222, %s226, %s225, %s206, 896, 896, 56
        $region36: #{encoder_forward.1} parent=31 // pred_fallthru
          _
      $region32: #{encoder_forward.1} parent=5 // pred_fallthru
        _
      %p231 = scmp.le.s32.totalorder 1, %s15
      %p232 = scmp.lt.s32.totalorder %s15, 3
      %p233 = pnand %p231, %p232
      %p234 = pneg %p233
      // Predicated region
      $region37: #{encoder_forward.1} parent=5 // pred_check
        _
      $region38: #{encoder_forward.1} parent=5 // pred_check_branch
        %236 = sbr.rel (%p233) target = $region40
      $region39: #{encoder_forward.1} parent=5 // pred_region
        %s237 = ssub.s32 %s15, 1
        %s238 = sand.u32 %s28, 1
        %s239 = scalar_lea.sflag [#allocation3], %s238
        %s240 = sand.u32 %s28, 1
        %s241 = smul.addr %s240, 224
        %s242 = scalar_lea.vmem [#allocation2], %s241
        // Predicated region
        $region41: #{encoder_forward.1} parent=39 // pred_check
          %p243 = pneg %p41
        $region42: #{encoder_forward.1} parent=39 // pred_check_branch
          %245 = sbr.rel (%p243) target = $region44
        $region43: #{encoder_forward.1} parent=39 // pred_region
          %246 = dma.done %s239, 3584
        $region44: #{encoder_forward.1} parent=39 // pred_fallthru
          _
        // Predicated region
        $region45: #{encoder_forward.1} parent=39 // pred_check
          %p247 = pneg %p62
        $region46: #{encoder_forward.1} parent=39 // pred_check_branch
          %249 = sbr.rel (%p247) target = $region48
        $region47: #{encoder_forward.1} parent=39 // pred_region
          %250 = dma.done [#allocation5], 25088
        $region48: #{encoder_forward.1} parent=39 // pred_fallthru
          _
        // Predicated region
        $region49: #{encoder_forward.1} parent=39 // pred_check
          %p251 = pneg %p104
        $region50: #{encoder_forward.1} parent=39 // pred_check_branch
          %253 = sbr.rel (%p251) target = $region52
        $region51: #{encoder_forward.1} parent=39 // pred_region
          %254 = dma.done [#allocation5], 4096
        $region52: #{encoder_forward.1} parent=39 // pred_fallthru
          _
        %s255 = sand.u32 %s28, 1
        %s256 = scalar_lea.sflag [#allocation3], %s255
        %s257 = sand.u32 %s28, 1
        %s258 = smul.addr %s257, 224
        %s259 = scalar_lea.vmem [#allocation2], %s258
        %p260 = pneg %p41
        %p261 = pneg %p38
        %p262 = pneg %p62
        %p263 = pneg %p59
        %p264 = pneg %p83
        %p265 = pneg %p80
        %p266 = pneg %p104
        %p267 = pneg %p101
        %p268 = pneg %p125
        %p269 = pneg %p122
        %p270 = pneg %p151
        %p271 = pneg %p148
        %s272 = sand.u32 %s138, 1
        %s273 = sand.u32 %s138, 1
        %s274 = smul.addr %s273, 32
        %s275 = scalar_lea.vmem [#allocation7], %s274
        %s276 = smul.u32 4, %s20
        %s277 = ssub.s32 6, %s276
        %p278 = scmp.lt.s32.totalorder %s277, 4
        %s279 = scalar_select %p278, %s277, 4
        %s280 = smul.u32 128, %s279
        %s281 = smul.u32 %s280, 7
        %s282 = smul.u32 4, %s20
        %s283 = ssub.s32 6, %s282
        %p284 = scmp.lt.s32.totalorder %s283, 4
        %s285 = scalar_select %p284, %s283, 4
        %s286 = smul.u32 128, %s285
        %v288 = vld [vmem:[%s242] sm:$0xff]
        %v289 = vld [vmem:[%s242 + $0x8] sm:$0xff]
        %v290 = vld [vmem:[%s242 + $0x10] sm:$0xff]
        %v291 = vld [vmem:[%s242 + $0x18] sm:$0xff]
        %v292 = vld [vmem:[%s242 + $0x20] sm:$0xff]
        %v293 = vld [vmem:[%s242 + $0x28] sm:$0xff]
        %v294 = vld [vmem:[%s242 + $0x30] sm:$0xff]
        %v295 = vld [vmem:[%s242 + $0x38] sm:$0xff]
        %v296 = vld [vmem:[%s242 + $0x40] sm:$0xff]
        %v297 = vld [vmem:[%s242 + $0x48] sm:$0xff]
        %v298 = vld [vmem:[%s242 + $0x50] sm:$0xff]
        %v299 = vld [vmem:[%s242 + $0x58] sm:$0xff]
        %v300 = vld [vmem:[%s242 + $0x60] sm:$0xff]
        %v301 = vld [vmem:[%s242 + $0x68] sm:$0xff]
        %v302 = vld [vmem:[%s242 + $0x70] sm:$0xff]
        %v303 = vld [vmem:[%s242 + $0x78] sm:$0xff]
        %v304 = vld [vmem:[%s242 + $0x80] sm:$0xff]
        %v305 = vld [vmem:[%s242 + $0x88] sm:$0xff]
        %v306 = vld [vmem:[%s242 + $0x90] sm:$0xff]
        %v307 = vld [vmem:[%s242 + $0x98] sm:$0xff]
        %v308 = vld [vmem:[%s242 + $0xa0] sm:$0xff]
        %v309 = vld [vmem:[%s242 + $0xa8] sm:$0xff]
        %v310 = vld [vmem:[%s242 + $0xb0] sm:$0xff]
        %v311 = vld [vmem:[%s242 + $0xb8] sm:$0xff]
        %v312 = vld [vmem:[%s242 + $0xc0] sm:$0xff]
        %v313 = vld [vmem:[%s242 + $0xc8] sm:$0xff]
        %v314 = vld [vmem:[%s242 + $0xd0] sm:$0xff]
        %v315 = vld [vmem:[%s242 + $0xd8] sm:$0xff]
        %v316 = vpack.c.bf16 %v295, %v288
        %v317 = vpack.c.bf16 %v296, %v289
        %v318 = vpack.c.bf16 %v297, %v290
        %v319 = vpack.c.bf16 %v298, %v291
        %v320 = vpack.c.bf16 %v299, %v292
        %v321 = vpack.c.bf16 %v300, %v293
        %v322 = vpack.c.bf16 %v301, %v294
        %v323 = vpack.c.bf16 %v309, %v302
        %v324 = vpack.c.bf16 %v310, %v303
        %v325 = vpack.c.bf16 %v311, %v304
        %v326 = vpack.c.bf16 %v312, %v305
        %v327 = vpack.c.bf16 %v313, %v306
        %v328 = vpack.c.bf16 %v314, %v307
        %v329 = vpack.c.bf16 %v315, %v308
        %v330 = vld [vmem:[#allocation4] sm:$0xff]
        %v331 = vld [vmem:[#allocation4 + $0x8] sm:$0xff]
        %v332 = vld [vmem:[#allocation4 + $0x10] sm:$0xff]
        %v333 = vld [vmem:[#allocation4 + $0x18] sm:$0xff]
        %v334 = vld [vmem:[#allocation4 + $0x20] sm:$0xff]
        %v335 = vld [vmem:[#allocation4 + $0x28] sm:$0xff]
        %v336 = vld [vmem:[#allocation4 + $0x30] sm:$0xff]
        %v337 = vld [vmem:[#allocation4 + $0x38] sm:$0xff]
        %v338 = vld [vmem:[#allocation4 + $0x40] sm:$0xff]
        %v339 = vld [vmem:[#allocation4 + $0x48] sm:$0xff]
        %v340 = vld [vmem:[#allocation4 + $0x50] sm:$0xff]
        %v341 = vld [vmem:[#allocation4 + $0x58] sm:$0xff]
        %v342 = vld [vmem:[#allocation4 + $0x60] sm:$0xff]
        %v343 = vld [vmem:[#allocation4 + $0x68] sm:$0xff]
        %v344 = vld [vmem:[#allocation4 + $0x70] sm:$0xff]
        %v345 = vld [vmem:[#allocation4 + $0x78] sm:$0xff]
        %v346 = vld [vmem:[#allocation4 + $0x80] sm:$0xff]
        %v347 = vld [vmem:[#allocation4 + $0x88] sm:$0xff]
        %v348 = vld [vmem:[#allocation4 + $0x90] sm:$0xff]
        %v349 = vld [vmem:[#allocation4 + $0x98] sm:$0xff]
        %v350 = vld [vmem:[#allocation4 + $0xa0] sm:$0xff]
        %v351 = vld [vmem:[#allocation4 + $0xa8] sm:$0xff]
        %v352 = vld [vmem:[#allocation4 + $0xb0] sm:$0xff]
        %v353 = vld [vmem:[#allocation4 + $0xb8] sm:$0xff]
        %v354 = vld [vmem:[#allocation4 + $0xc0] sm:$0xff]
        %v355 = vld [vmem:[#allocation4 + $0xc8] sm:$0xff]
        %v356 = vld [vmem:[#allocation4 + $0xd0] sm:$0xff]
        %v357 = vld [vmem:[#allocation4 + $0xd8] sm:$0xff]
        %v358 = vld [vmem:[#allocation4 + $0xe0] sm:$0xff]
        %v359 = vld [vmem:[#allocation4 + $0xe8] sm:$0xff]
        %v360 = vld [vmem:[#allocation4 + $0xf0] sm:$0xff]
        %v361 = vld [vmem:[#allocation4 + $0xf8] sm:$0xff]
        %v362 = vld [vmem:[#allocation4 + $0x100] sm:$0xff]
        %v363 = vld [vmem:[#allocation4 + $0x108] sm:$0xff]
        %v364 = vld [vmem:[#allocation4 + $0x110] sm:$0xff]
        %v365 = vld [vmem:[#allocation4 + $0x118] sm:$0xff]
        %v366 = vld [vmem:[#allocation4 + $0x120] sm:$0xff]
        %v367 = vld [vmem:[#allocation4 + $0x128] sm:$0xff]
        %v368 = vld [vmem:[#allocation4 + $0x130] sm:$0xff]
        %v369 = vld [vmem:[#allocation4 + $0x138] sm:$0xff]
        %v370 = vld [vmem:[#allocation4 + $0x140] sm:$0xff]
        %v371 = vld [vmem:[#allocation4 + $0x148] sm:$0xff]
        %v372 = vld [vmem:[#allocation4 + $0x150] sm:$0xff]
        %v373 = vld [vmem:[#allocation4 + $0x158] sm:$0xff]
        %v374 = vld [vmem:[#allocation4 + $0x160] sm:$0xff]
        %v375 = vld [vmem:[#allocation4 + $0x168] sm:$0xff]
        %v376 = vld [vmem:[#allocation4 + $0x170] sm:$0xff]
        %v377 = vld [vmem:[#allocation4 + $0x178] sm:$0xff]
        %v378 = vld [vmem:[#allocation4 + $0x180] sm:$0xff]
        %v379 = vld [vmem:[#allocation4 + $0x188] sm:$0xff]
        %v380 = vld [vmem:[#allocation4 + $0x190] sm:$0xff]
        %v381 = vld [vmem:[#allocation4 + $0x198] sm:$0xff]
        %v382 = vld [vmem:[#allocation4 + $0x1a0] sm:$0xff]
        %v383 = vld [vmem:[#allocation4 + $0x1a8] sm:$0xff]
        %v384 = vld [vmem:[#allocation4 + $0x1b0] sm:$0xff]
        %v385 = vld [vmem:[#allocation4 + $0x1b8] sm:$0xff]
        %v386 = vld [vmem:[#allocation4 + $0x1c0] sm:$0xff]
        %v387 = vld [vmem:[#allocation4 + $0x1c8] sm:$0xff]
        %v388 = vld [vmem:[#allocation4 + $0x1d0] sm:$0xff]
        %v389 = vld [vmem:[#allocation4 + $0x1d8] sm:$0xff]
        %v390 = vld [vmem:[#allocation4 + $0x1e0] sm:$0xff]
        %v391 = vld [vmem:[#allocation4 + $0x1e8] sm:$0xff]
        %v392 = vld [vmem:[#allocation4 + $0x1f0] sm:$0xff]
        %v393 = vld [vmem:[#allocation4 + $0x1f8] sm:$0xff]
        %v394 = vld [vmem:[#allocation4 + $0x200] sm:$0xff]
        %v395 = vld [vmem:[#allocation4 + $0x208] sm:$0xff]
        %v396 = vld [vmem:[#allocation4 + $0x210] sm:$0xff]
        %v397 = vld [vmem:[#allocation4 + $0x218] sm:$0xff]
        %v398 = vld [vmem:[#allocation4 + $0x220] sm:$0xff]
        %v399 = vld [vmem:[#allocation4 + $0x228] sm:$0xff]
        %v400 = vld [vmem:[#allocation4 + $0x230] sm:$0xff]
        %v401 = vld [vmem:[#allocation4 + $0x238] sm:$0xff]
        %v402 = vld [vmem:[#allocation4 + $0x240] sm:$0xff]
        %v403 = vld [vmem:[#allocation4 + $0x248] sm:$0xff]
        %v404 = vld [vmem:[#allocation4 + $0x250] sm:$0xff]
        %v405 = vld [vmem:[#allocation4 + $0x258] sm:$0xff]
        %v406 = vld [vmem:[#allocation4 + $0x260] sm:$0xff]
        %v407 = vld [vmem:[#allocation4 + $0x268] sm:$0xff]
        %v408 = vld [vmem:[#allocation4 + $0x270] sm:$0xff]
        %v409 = vld [vmem:[#allocation4 + $0x278] sm:$0xff]
        %v410 = vld [vmem:[#allocation4 + $0x280] sm:$0xff]
        %v411 = vld [vmem:[#allocation4 + $0x288] sm:$0xff]
        %v412 = vld [vmem:[#allocation4 + $0x290] sm:$0xff]
        %v413 = vld [vmem:[#allocation4 + $0x298] sm:$0xff]
        %v414 = vld [vmem:[#allocation4 + $0x2a0] sm:$0xff]
        %v415 = vld [vmem:[#allocation4 + $0x2a8] sm:$0xff]
        %v416 = vld [vmem:[#allocation4 + $0x2b0] sm:$0xff]
        %v417 = vld [vmem:[#allocation4 + $0x2b8] sm:$0xff]
        %v418 = vld [vmem:[#allocation4 + $0x2c0] sm:$0xff]
        %v419 = vld [vmem:[#allocation4 + $0x2c8] sm:$0xff]
        %v420 = vld [vmem:[#allocation4 + $0x2d0] sm:$0xff]
        %v421 = vld [vmem:[#allocation4 + $0x2d8] sm:$0xff]
        %v422 = vld [vmem:[#allocation4 + $0x2e0] sm:$0xff]
        %v423 = vld [vmem:[#allocation4 + $0x2e8] sm:$0xff]
        %v424 = vld [vmem:[#allocation4 + $0x2f0] sm:$0xff]
        %v425 = vld [vmem:[#allocation4 + $0x2f8] sm:$0xff]
        %v426 = vld [vmem:[#allocation4 + $0x300] sm:$0xff]
        %v427 = vld [vmem:[#allocation4 + $0x308] sm:$0xff]
        %v428 = vld [vmem:[#allocation4 + $0x310] sm:$0xff]
        %v429 = vld [vmem:[#allocation4 + $0x318] sm:$0xff]
        %v430 = vld [vmem:[#allocation4 + $0x320] sm:$0xff]
        %v431 = vld [vmem:[#allocation4 + $0x328] sm:$0xff]
        %v432 = vld [vmem:[#allocation4 + $0x330] sm:$0xff]
        %v433 = vld [vmem:[#allocation4 + $0x338] sm:$0xff]
        %v434 = vld [vmem:[#allocation4 + $0x340] sm:$0xff]
        %v435 = vld [vmem:[#allocation4 + $0x348] sm:$0xff]
        %v436 = vld [vmem:[#allocation4 + $0x350] sm:$0xff]
        %v437 = vld [vmem:[#allocation4 + $0x358] sm:$0xff]
        %v438 = vld [vmem:[#allocation4 + $0x360] sm:$0xff]
        %v439 = vld [vmem:[#allocation4 + $0x368] sm:$0xff]
        %v440 = vld [vmem:[#allocation4 + $0x370] sm:$0xff]
        %v441 = vld [vmem:[#allocation4 + $0x378] sm:$0xff]
        %v442 = vld [vmem:[#allocation4 + $0x380] sm:$0xff]
        %v443 = vld [vmem:[#allocation4 + $0x388] sm:$0xff]
        %v444 = vld [vmem:[#allocation4 + $0x390] sm:$0xff]
        %v445 = vld [vmem:[#allocation4 + $0x398] sm:$0xff]
        %v446 = vld [vmem:[#allocation4 + $0x3a0] sm:$0xff]
        %v447 = vld [vmem:[#allocation4 + $0x3a8] sm:$0xff]
        %v448 = vld [vmem:[#allocation4 + $0x3b0] sm:$0xff]
        %v449 = vld [vmem:[#allocation4 + $0x3b8] sm:$0xff]
        %v450 = vld [vmem:[#allocation4 + $0x3c0] sm:$0xff]
        %v451 = vld [vmem:[#allocation4 + $0x3c8] sm:$0xff]
        %v452 = vld [vmem:[#allocation4 + $0x3d0] sm:$0xff]
        %v453 = vld [vmem:[#allocation4 + $0x3d8] sm:$0xff]
        %v454 = vld [vmem:[#allocation4 + $0x3e0] sm:$0xff]
        %v455 = vld [vmem:[#allocation4 + $0x3e8] sm:$0xff]
        %v456 = vld [vmem:[#allocation4 + $0x3f0] sm:$0xff]
        %v457 = vld [vmem:[#allocation4 + $0x3f8] sm:$0xff]
        %v458 = vld [vmem:[#allocation4 + $0x400] sm:$0xff]
        %v459 = vld [vmem:[#allocation4 + $0x408] sm:$0xff]
        %v460 = vld [vmem:[#allocation4 + $0x410] sm:$0xff]
        %v461 = vld [vmem:[#allocation4 + $0x418] sm:$0xff]
        %v462 = vld [vmem:[#allocation4 + $0x420] sm:$0xff]
        %v463 = vld [vmem:[#allocation4 + $0x428] sm:$0xff]
        %v464 = vld [vmem:[#allocation4 + $0x430] sm:$0xff]
        %v465 = vld [vmem:[#allocation4 + $0x438] sm:$0xff]
        %v466 = vld [vmem:[#allocation4 + $0x440] sm:$0xff]
        %v467 = vld [vmem:[#allocation4 + $0x448] sm:$0xff]
        %v468 = vld [vmem:[#allocation4 + $0x450] sm:$0xff]
        %v469 = vld [vmem:[#allocation4 + $0x458] sm:$0xff]
        %v470 = vld [vmem:[#allocation4 + $0x460] sm:$0xff]
        %v471 = vld [vmem:[#allocation4 + $0x468] sm:$0xff]
        %v472 = vld [vmem:[#allocation4 + $0x470] sm:$0xff]
        %v473 = vld [vmem:[#allocation4 + $0x478] sm:$0xff]
        %v474 = vld [vmem:[#allocation4 + $0x480] sm:$0xff]
        %v475 = vld [vmem:[#allocation4 + $0x488] sm:$0xff]
        %v476 = vld [vmem:[#allocation4 + $0x490] sm:$0xff]
        %v477 = vld [vmem:[#allocation4 + $0x498] sm:$0xff]
        %v478 = vld [vmem:[#allocation4 + $0x4a0] sm:$0xff]
        %v479 = vld [vmem:[#allocation4 + $0x4a8] sm:$0xff]
        %v480 = vld [vmem:[#allocation4 + $0x4b0] sm:$0xff]
        %v481 = vld [vmem:[#allocation4 + $0x4b8] sm:$0xff]
        %v482 = vld [vmem:[#allocation4 + $0x4c0] sm:$0xff]
        %v483 = vld [vmem:[#allocation4 + $0x4c8] sm:$0xff]
        %v484 = vld [vmem:[#allocation4 + $0x4d0] sm:$0xff]
        %v485 = vld [vmem:[#allocation4 + $0x4d8] sm:$0xff]
        %v486 = vld [vmem:[#allocation4 + $0x4e0] sm:$0xff]
        %v487 = vld [vmem:[#allocation4 + $0x4e8] sm:$0xff]
        %v488 = vld [vmem:[#allocation4 + $0x4f0] sm:$0xff]
        %v489 = vld [vmem:[#allocation4 + $0x4f8] sm:$0xff]
        %v490 = vld [vmem:[#allocation4 + $0x500] sm:$0xff]
        %v491 = vld [vmem:[#allocation4 + $0x508] sm:$0xff]
        %v492 = vld [vmem:[#allocation4 + $0x510] sm:$0xff]
        %v493 = vld [vmem:[#allocation4 + $0x518] sm:$0xff]
        %v494 = vld [vmem:[#allocation4 + $0x520] sm:$0xff]
        %v495 = vld [vmem:[#allocation4 + $0x528] sm:$0xff]
        %v496 = vld [vmem:[#allocation4 + $0x530] sm:$0xff]
        %v497 = vld [vmem:[#allocation4 + $0x538] sm:$0xff]
        %v498 = vld [vmem:[#allocation4 + $0x540] sm:$0xff]
        %v499 = vld [vmem:[#allocation4 + $0x548] sm:$0xff]
        %v500 = vld [vmem:[#allocation4 + $0x550] sm:$0xff]
        %v501 = vld [vmem:[#allocation4 + $0x558] sm:$0xff]
        %v502 = vld [vmem:[#allocation4 + $0x560] sm:$0xff]
        %v503 = vld [vmem:[#allocation4 + $0x568] sm:$0xff]
        %v504 = vld [vmem:[#allocation4 + $0x570] sm:$0xff]
        %v505 = vld [vmem:[#allocation4 + $0x578] sm:$0xff]
        %v506 = vld [vmem:[#allocation4 + $0x580] sm:$0xff]
        %v507 = vld [vmem:[#allocation4 + $0x588] sm:$0xff]
        %v508 = vld [vmem:[#allocation4 + $0x590] sm:$0xff]
        %v509 = vld [vmem:[#allocation4 + $0x598] sm:$0xff]
        %v510 = vld [vmem:[#allocation4 + $0x5a0] sm:$0xff]
        %v511 = vld [vmem:[#allocation4 + $0x5a8] sm:$0xff]
        %v512 = vld [vmem:[#allocation4 + $0x5b0] sm:$0xff]
        %v513 = vld [vmem:[#allocation4 + $0x5b8] sm:$0xff]
        %v514 = vld [vmem:[#allocation4 + $0x5c0] sm:$0xff]
        %v515 = vld [vmem:[#allocation4 + $0x5c8] sm:$0xff]
        %v516 = vld [vmem:[#allocation4 + $0x5d0] sm:$0xff]
        %v517 = vld [vmem:[#allocation4 + $0x5d8] sm:$0xff]
        %v518 = vld [vmem:[#allocation4 + $0x5e0] sm:$0xff]
        %v519 = vld [vmem:[#allocation4 + $0x5e8] sm:$0xff]
        %v520 = vld [vmem:[#allocation4 + $0x5f0] sm:$0xff]
        %v521 = vld [vmem:[#allocation4 + $0x5f8] sm:$0xff]
        %v522 = vld [vmem:[#allocation4 + $0x600] sm:$0xff]
        %v523 = vld [vmem:[#allocation4 + $0x608] sm:$0xff]
        %v524 = vld [vmem:[#allocation4 + $0x610] sm:$0xff]
        %v525 = vld [vmem:[#allocation4 + $0x618] sm:$0xff]
        %v526 = vld [vmem:[%s2] sm:$0xf]
        %v528 = vlaneseq
        %v529 = vshrl.u32 %v528, 7
        %v530 = vsub.s32 0, %v529
        %v531 = vrot.slane %v526, %v530
        %v532 = vlaneseq
        %v533 = vshrl.u32 %v532, 7
        %v534 = vsub.s32 1, %v533
        %v535 = vrot.slane %v526, %v534
        %v536 = vlaneseq
        %v537 = vshrl.u32 %v536, 7
        %v538 = vsub.s32 2, %v537
        %v539 = vrot.slane %v526, %v538
        %v540 = vlaneseq
        %v541 = vshrl.u32 %v540, 7
        %v542 = vsub.s32 3, %v541
        %v543 = vrot.slane %v526, %v542
        %v744 = vunpack.c.l.b16 %v330
        %v745 = vunpack.c.h.b16 %v330
        %v746 = vunpack.c.l.b16 %v331
        %v747 = vunpack.c.h.b16 %v331
        %v748 = vunpack.c.l.b16 %v332
        %v749 = vunpack.c.h.b16 %v332
        %v750 = vunpack.c.l.b16 %v333
        %v751 = vunpack.c.h.b16 %v333
        %v752 = vunpack.c.l.b16 %v334
        %v753 = vunpack.c.h.b16 %v334
        %v754 = vunpack.c.l.b16 %v335
        %v755 = vunpack.c.h.b16 %v335
        %v756 = vunpack.c.l.b16 %v336
        %v757 = vunpack.c.h.b16 %v336
        %v758 = vunpack.c.l.b16 %v337
        %v759 = vunpack.c.h.b16 %v337
        %v760 = vunpack.c.l.b16 %v338
        %v761 = vunpack.c.h.b16 %v338
        %v762 = vunpack.c.l.b16 %v339
        %v763 = vunpack.c.h.b16 %v339
        %v764 = vunpack.c.l.b16 %v340
        %v765 = vunpack.c.h.b16 %v340
        %v766 = vunpack.c.l.b16 %v341
        %v767 = vunpack.c.h.b16 %v341
        %v768 = vunpack.c.l.b16 %v342
        %v769 = vunpack.c.h.b16 %v342
        %v770 = vunpack.c.l.b16 %v343
        %v771 = vunpack.c.h.b16 %v343
        %v772 = vunpack.c.l.b16 %v344
        %v773 = vunpack.c.h.b16 %v344
        %v774 = vunpack.c.l.b16 %v345
        %v775 = vunpack.c.h.b16 %v345
        %v776 = vunpack.c.l.b16 %v346
        %v777 = vunpack.c.h.b16 %v346
        %v778 = vunpack.c.l.b16 %v347
        %v779 = vunpack.c.h.b16 %v347
        %v780 = vunpack.c.l.b16 %v348
        %v781 = vunpack.c.h.b16 %v348
        %v782 = vunpack.c.l.b16 %v349
        %v783 = vunpack.c.h.b16 %v349
        %v784 = vunpack.c.l.b16 %v350
        %v785 = vunpack.c.h.b16 %v350
        %v786 = vunpack.c.l.b16 %v351
        %v787 = vunpack.c.h.b16 %v351
        %v788 = vunpack.c.l.b16 %v352
        %v789 = vunpack.c.h.b16 %v352
        %v790 = vunpack.c.l.b16 %v353
        %v791 = vunpack.c.h.b16 %v353
        %v792 = vunpack.c.l.b16 %v354
        %v793 = vunpack.c.h.b16 %v354
        %v794 = vunpack.c.l.b16 %v355
        %v795 = vunpack.c.h.b16 %v355
        %v796 = vunpack.c.l.b16 %v356
        %v797 = vunpack.c.h.b16 %v356
        %v798 = vunpack.c.l.b16 %v357
        %v799 = vunpack.c.h.b16 %v357
        %v800 = vunpack.c.l.b16 %v358
        %v801 = vunpack.c.h.b16 %v358
        %v802 = vunpack.c.l.b16 %v359
        %v803 = vunpack.c.h.b16 %v359
        %v804 = vunpack.c.l.b16 %v360
        %v805 = vunpack.c.h.b16 %v360
        %v806 = vunpack.c.l.b16 %v361
        %v807 = vunpack.c.h.b16 %v361
        %v808 = vunpack.c.l.b16 %v362
        %v809 = vunpack.c.h.b16 %v362
        %v810 = vunpack.c.l.b16 %v363
        %v811 = vunpack.c.h.b16 %v363
        %v812 = vunpack.c.l.b16 %v364
        %v813 = vunpack.c.h.b16 %v364
        %v814 = vunpack.c.l.b16 %v365
        %v815 = vunpack.c.h.b16 %v365
        %v816 = vunpack.c.l.b16 %v366
        %v817 = vunpack.c.h.b16 %v366
        %v818 = vunpack.c.l.b16 %v367
        %v819 = vunpack.c.h.b16 %v367
        %v820 = vunpack.c.l.b16 %v368
        %v821 = vunpack.c.h.b16 %v368
        %v822 = vunpack.c.l.b16 %v369
        %v823 = vunpack.c.h.b16 %v369
        %v824 = vunpack.c.l.b16 %v370
        %v825 = vunpack.c.h.b16 %v370
        %v826 = vunpack.c.l.b16 %v371
        %v827 = vunpack.c.h.b16 %v371
        %v828 = vunpack.c.l.b16 %v372
        %v829 = vunpack.c.h.b16 %v372
        %v830 = vunpack.c.l.b16 %v373
        %v831 = vunpack.c.h.b16 %v373
        %v832 = vunpack.c.l.b16 %v374
        %v833 = vunpack.c.h.b16 %v374
        %v834 = vunpack.c.l.b16 %v375
        %v835 = vunpack.c.h.b16 %v375
        %v836 = vunpack.c.l.b16 %v376
        %v837 = vunpack.c.h.b16 %v376
        %v838 = vunpack.c.l.b16 %v377
        %v839 = vunpack.c.h.b16 %v377
        %v840 = vunpack.c.l.b16 %v378
        %v841 = vunpack.c.h.b16 %v378
        %v842 = vunpack.c.l.b16 %v379
        %v843 = vunpack.c.h.b16 %v379
        %v844 = vunpack.c.l.b16 %v380
        %v845 = vunpack.c.h.b16 %v380
        %v846 = vunpack.c.l.b16 %v381
        %v847 = vunpack.c.h.b16 %v381
        %v848 = vunpack.c.l.b16 %v382
        %v849 = vunpack.c.h.b16 %v382
        %v850 = vunpack.c.l.b16 %v383
        %v851 = vunpack.c.h.b16 %v383
        %v852 = vunpack.c.l.b16 %v384
        %v853 = vunpack.c.h.b16 %v384
        %v854 = vunpack.c.l.b16 %v385
        %v855 = vunpack.c.h.b16 %v385
        %v856 = vunpack.c.l.b16 %v386
        %v857 = vunpack.c.h.b16 %v386
        %v858 = vunpack.c.l.b16 %v387
        %v859 = vunpack.c.h.b16 %v387
        %v860 = vunpack.c.l.b16 %v388
        %v861 = vunpack.c.h.b16 %v388
        %v862 = vunpack.c.l.b16 %v389
        %v863 = vunpack.c.h.b16 %v389
        %v864 = vunpack.c.l.b16 %v390
        %v865 = vunpack.c.h.b16 %v390
        %v866 = vunpack.c.l.b16 %v391
        %v867 = vunpack.c.h.b16 %v391
        %v868 = vunpack.c.l.b16 %v392
        %v869 = vunpack.c.h.b16 %v392
        %v870 = vunpack.c.l.b16 %v393
        %v871 = vunpack.c.h.b16 %v393
        %v872 = vunpack.c.l.b16 %v394
        %v873 = vunpack.c.h.b16 %v394
        %v874 = vunpack.c.l.b16 %v395
        %v875 = vunpack.c.h.b16 %v395
        %v876 = vunpack.c.l.b16 %v396
        %v877 = vunpack.c.h.b16 %v396
        %v878 = vunpack.c.l.b16 %v397
        %v879 = vunpack.c.h.b16 %v397
        %v880 = vunpack.c.l.b16 %v398
        %v881 = vunpack.c.h.b16 %v398
        %v882 = vunpack.c.l.b16 %v399
        %v883 = vunpack.c.h.b16 %v399
        %v884 = vunpack.c.l.b16 %v400
        %v885 = vunpack.c.h.b16 %v400
        %v886 = vunpack.c.l.b16 %v401
        %v887 = vunpack.c.h.b16 %v401
        %v888 = vunpack.c.l.b16 %v402
        %v889 = vunpack.c.h.b16 %v402
        %v890 = vunpack.c.l.b16 %v403
        %v891 = vunpack.c.h.b16 %v403
        %v892 = vunpack.c.l.b16 %v404
        %v893 = vunpack.c.h.b16 %v404
        %v894 = vunpack.c.l.b16 %v405
        %v895 = vunpack.c.h.b16 %v405
        %v896 = vunpack.c.l.b16 %v406
        %v897 = vunpack.c.h.b16 %v406
        %v898 = vunpack.c.l.b16 %v407
        %v899 = vunpack.c.h.b16 %v407
        %v900 = vunpack.c.l.b16 %v408
        %v901 = vunpack.c.h.b16 %v408
        %v902 = vunpack.c.l.b16 %v409
        %v903 = vunpack.c.h.b16 %v409
        %v904 = vunpack.c.l.b16 %v410
        %v905 = vunpack.c.h.b16 %v410
        %v906 = vunpack.c.l.b16 %v411
        %v907 = vunpack.c.h.b16 %v411
        %v908 = vunpack.c.l.b16 %v412
        %v909 = vunpack.c.h.b16 %v412
        %v910 = vunpack.c.l.b16 %v413
        %v911 = vunpack.c.h.b16 %v413
        %v912 = vunpack.c.l.b16 %v414
        %v913 = vunpack.c.h.b16 %v414
        %v914 = vunpack.c.l.b16 %v415
        %v915 = vunpack.c.h.b16 %v415
        %v916 = vunpack.c.l.b16 %v416
        %v917 = vunpack.c.h.b16 %v416
        %v918 = vunpack.c.l.b16 %v417
        %v919 = vunpack.c.h.b16 %v417
        %v920 = vunpack.c.l.b16 %v418
        %v921 = vunpack.c.h.b16 %v418
        %v922 = vunpack.c.l.b16 %v419
        %v923 = vunpack.c.h.b16 %v419
        %v924 = vunpack.c.l.b16 %v420
        %v925 = vunpack.c.h.b16 %v420
        %v926 = vunpack.c.l.b16 %v421
        %v927 = vunpack.c.h.b16 %v421
        %v928 = vunpack.c.l.b16 %v422
        %v929 = vunpack.c.h.b16 %v422
        %v930 = vunpack.c.l.b16 %v423
        %v931 = vunpack.c.h.b16 %v423
        %v932 = vunpack.c.l.b16 %v424
        %v933 = vunpack.c.h.b16 %v424
        %v934 = vunpack.c.l.b16 %v425
        %v935 = vunpack.c.h.b16 %v425
        %v936 = vunpack.c.l.b16 %v426
        %v937 = vunpack.c.h.b16 %v426
        %v938 = vunpack.c.l.b16 %v427
        %v939 = vunpack.c.h.b16 %v427
        %v940 = vunpack.c.l.b16 %v428
        %v941 = vunpack.c.h.b16 %v428
        %v942 = vunpack.c.l.b16 %v429
        %v943 = vunpack.c.h.b16 %v429
        %v944 = vunpack.c.l.b16 %v430
        %v945 = vunpack.c.h.b16 %v430
        %v946 = vunpack.c.l.b16 %v431
        %v947 = vunpack.c.h.b16 %v431
        %v948 = vunpack.c.l.b16 %v432
        %v949 = vunpack.c.h.b16 %v432
        %v950 = vunpack.c.l.b16 %v433
        %v951 = vunpack.c.h.b16 %v433
        %v952 = vunpack.c.l.b16 %v434
        %v953 = vunpack.c.h.b16 %v434
        %v954 = vunpack.c.l.b16 %v435
        %v955 = vunpack.c.h.b16 %v435
        %v956 = vunpack.c.l.b16 %v436
        %v957 = vunpack.c.h.b16 %v436
        %v958 = vunpack.c.l.b16 %v437
        %v959 = vunpack.c.h.b16 %v437
        %v960 = vunpack.c.l.b16 %v438
        %v961 = vunpack.c.h.b16 %v438
        %v962 = vunpack.c.l.b16 %v439
        %v963 = vunpack.c.h.b16 %v439
        %v964 = vunpack.c.l.b16 %v440
        %v965 = vunpack.c.h.b16 %v440
        %v966 = vunpack.c.l.b16 %v441
        %v967 = vunpack.c.h.b16 %v441
        %v968 = vunpack.c.l.b16 %v442
        %v969 = vunpack.c.h.b16 %v442
        %v970 = vunpack.c.l.b16 %v443
        %v971 = vunpack.c.h.b16 %v443
        %v972 = vunpack.c.l.b16 %v444
        %v973 = vunpack.c.h.b16 %v444
        %v974 = vunpack.c.l.b16 %v445
        %v975 = vunpack.c.h.b16 %v445
        %v976 = vunpack.c.l.b16 %v446
        %v977 = vunpack.c.h.b16 %v446
        %v978 = vunpack.c.l.b16 %v447
        %v979 = vunpack.c.h.b16 %v447
        %v980 = vunpack.c.l.b16 %v448
        %v981 = vunpack.c.h.b16 %v448
        %v982 = vunpack.c.l.b16 %v449
        %v983 = vunpack.c.h.b16 %v449
        %v984 = vunpack.c.l.b16 %v450
        %v985 = vunpack.c.h.b16 %v450
        %v986 = vunpack.c.l.b16 %v451
        %v987 = vunpack.c.h.b16 %v451
        %v988 = vunpack.c.l.b16 %v452
        %v989 = vunpack.c.h.b16 %v452
        %v990 = vunpack.c.l.b16 %v453
        %v991 = vunpack.c.h.b16 %v453
        %v992 = vunpack.c.l.b16 %v454
        %v993 = vunpack.c.h.b16 %v454
        %v994 = vunpack.c.l.b16 %v455
        %v995 = vunpack.c.h.b16 %v455
        %v996 = vunpack.c.l.b16 %v456
        %v997 = vunpack.c.h.b16 %v456
        %v998 = vunpack.c.l.b16 %v457
        %v999 = vunpack.c.h.b16 %v457
        %v1000 = vunpack.c.l.b16 %v458
        %v1001 = vunpack.c.h.b16 %v458
        %v1002 = vunpack.c.l.b16 %v459
        %v1003 = vunpack.c.h.b16 %v459
        %v1004 = vunpack.c.l.b16 %v460
        %v1005 = vunpack.c.h.b16 %v460
        %v1006 = vunpack.c.l.b16 %v461
        %v1007 = vunpack.c.h.b16 %v461
        %v1008 = vunpack.c.l.b16 %v462
        %v1009 = vunpack.c.h.b16 %v462
        %v1010 = vunpack.c.l.b16 %v463
        %v1011 = vunpack.c.h.b16 %v463
        %v1012 = vunpack.c.l.b16 %v464
        %v1013 = vunpack.c.h.b16 %v464
        %v1014 = vunpack.c.l.b16 %v465
        %v1015 = vunpack.c.h.b16 %v465
        %v1016 = vunpack.c.l.b16 %v466
        %v1017 = vunpack.c.h.b16 %v466
        %v1018 = vunpack.c.l.b16 %v467
        %v1019 = vunpack.c.h.b16 %v467
        %v1020 = vunpack.c.l.b16 %v468
        %v1021 = vunpack.c.h.b16 %v468
        %v1022 = vunpack.c.l.b16 %v469
        %v1023 = vunpack.c.h.b16 %v469
        %v1024 = vunpack.c.l.b16 %v470
        %v1025 = vunpack.c.h.b16 %v470
        %v1026 = vunpack.c.l.b16 %v471
        %v1027 = vunpack.c.h.b16 %v471
        %v1028 = vunpack.c.l.b16 %v472
        %v1029 = vunpack.c.h.b16 %v472
        %v1030 = vunpack.c.l.b16 %v473
        %v1031 = vunpack.c.h.b16 %v473
        %v1032 = vunpack.c.l.b16 %v474
        %v1033 = vunpack.c.h.b16 %v474
        %v1034 = vunpack.c.l.b16 %v475
        %v1035 = vunpack.c.h.b16 %v475
        %v1036 = vunpack.c.l.b16 %v476
        %v1037 = vunpack.c.h.b16 %v476
        %v1038 = vunpack.c.l.b16 %v477
        %v1039 = vunpack.c.h.b16 %v477
        %v1040 = vunpack.c.l.b16 %v478
        %v1041 = vunpack.c.h.b16 %v478
        %v1042 = vunpack.c.l.b16 %v479
        %v1043 = vunpack.c.h.b16 %v479
        %v1044 = vunpack.c.l.b16 %v480
        %v1045 = vunpack.c.h.b16 %v480
        %v1046 = vunpack.c.l.b16 %v481
        %v1047 = vunpack.c.h.b16 %v481
        %v1048 = vunpack.c.l.b16 %v482
        %v1049 = vunpack.c.h.b16 %v482
        %v1050 = vunpack.c.l.b16 %v483
        %v1051 = vunpack.c.h.b16 %v483
        %v1052 = vunpack.c.l.b16 %v484
        %v1053 = vunpack.c.h.b16 %v484
        %v1054 = vunpack.c.l.b16 %v485
        %v1055 = vunpack.c.h.b16 %v485
        %v1056 = vunpack.c.l.b16 %v486
        %v1057 = vunpack.c.h.b16 %v486
        %v1058 = vunpack.c.l.b16 %v487
        %v1059 = vunpack.c.h.b16 %v487
        %v1060 = vunpack.c.l.b16 %v488
        %v1061 = vunpack.c.h.b16 %v488
        %v1062 = vunpack.c.l.b16 %v489
        %v1063 = vunpack.c.h.b16 %v489
        %v1064 = vunpack.c.l.b16 %v490
        %v1065 = vunpack.c.h.b16 %v490
        %v1066 = vunpack.c.l.b16 %v491
        %v1067 = vunpack.c.h.b16 %v491
        %v1068 = vunpack.c.l.b16 %v492
        %v1069 = vunpack.c.h.b16 %v492
        %v1070 = vunpack.c.l.b16 %v493
        %v1071 = vunpack.c.h.b16 %v493
        %v1072 = vunpack.c.l.b16 %v494
        %v1073 = vunpack.c.h.b16 %v494
        %v1074 = vunpack.c.l.b16 %v495
        %v1075 = vunpack.c.h.b16 %v495
        %v1076 = vunpack.c.l.b16 %v496
        %v1077 = vunpack.c.h.b16 %v496
        %v1078 = vunpack.c.l.b16 %v497
        %v1079 = vunpack.c.h.b16 %v497
        %v1080 = vunpack.c.l.b16 %v498
        %v1081 = vunpack.c.h.b16 %v498
        %v1082 = vunpack.c.l.b16 %v499
        %v1083 = vunpack.c.h.b16 %v499
        %v1084 = vunpack.c.l.b16 %v500
        %v1085 = vunpack.c.h.b16 %v500
        %v1086 = vunpack.c.l.b16 %v501
        %v1087 = vunpack.c.h.b16 %v501
        %v1088 = vunpack.c.l.b16 %v502
        %v1089 = vunpack.c.h.b16 %v502
        %v1090 = vunpack.c.l.b16 %v503
        %v1091 = vunpack.c.h.b16 %v503
        %v1092 = vunpack.c.l.b16 %v504
        %v1093 = vunpack.c.h.b16 %v504
        %v1094 = vunpack.c.l.b16 %v505
        %v1095 = vunpack.c.h.b16 %v505
        %v1096 = vunpack.c.l.b16 %v506
        %v1097 = vunpack.c.h.b16 %v506
        %v1098 = vunpack.c.l.b16 %v507
        %v1099 = vunpack.c.h.b16 %v507
        %v1100 = vunpack.c.l.b16 %v508
        %v1101 = vunpack.c.h.b16 %v508
        %v1102 = vunpack.c.l.b16 %v509
        %v1103 = vunpack.c.h.b16 %v509
        %v1104 = vunpack.c.l.b16 %v510
        %v1105 = vunpack.c.h.b16 %v510
        %v1106 = vunpack.c.l.b16 %v511
        %v1107 = vunpack.c.h.b16 %v511
        %v1108 = vunpack.c.l.b16 %v512
        %v1109 = vunpack.c.h.b16 %v512
        %v1110 = vunpack.c.l.b16 %v513
        %v1111 = vunpack.c.h.b16 %v513
        %v1112 = vunpack.c.l.b16 %v514
        %v1113 = vunpack.c.h.b16 %v514
        %v1114 = vunpack.c.l.b16 %v515
        %v1115 = vunpack.c.h.b16 %v515
        %v1116 = vunpack.c.l.b16 %v516
        %v1117 = vunpack.c.h.b16 %v516
        %v1118 = vunpack.c.l.b16 %v517
        %v1119 = vunpack.c.h.b16 %v517
        %v1120 = vunpack.c.l.b16 %v518
        %v1121 = vunpack.c.h.b16 %v518
        %v1122 = vunpack.c.l.b16 %v519
        %v1123 = vunpack.c.h.b16 %v519
        %v1124 = vunpack.c.l.b16 %v520
        %v1125 = vunpack.c.h.b16 %v520
        %v1126 = vunpack.c.l.b16 %v521
        %v1127 = vunpack.c.h.b16 %v521
        %v1128 = vunpack.c.l.b16 %v522
        %v1129 = vunpack.c.h.b16 %v522
        %v1130 = vunpack.c.l.b16 %v523
        %v1131 = vunpack.c.h.b16 %v523
        %v1132 = vunpack.c.l.b16 %v524
        %v1133 = vunpack.c.h.b16 %v524
        %v1134 = vunpack.c.l.b16 %v525
        %v1135 = vunpack.c.h.b16 %v525
        %v1136 = vpack.c.b16 %v748, %v744
        %v1137 = vpack.c.b16 %v749, %v745
        %v1138 = vpack.c.b16 %v750, %v746
        %v1139 = vpack.c.b16 %v751, %v747
        %v1140 = vpack.c.b16 %v756, %v752
        %v1141 = vpack.c.b16 %v757, %v753
        %v1142 = vpack.c.b16 %v758, %v754
        %v1143 = vpack.c.b16 %v759, %v755
        %v1144 = vpack.c.b16 %v764, %v760
        %v1145 = vpack.c.b16 %v765, %v761
        %v1146 = vpack.c.b16 %v766, %v762
        %v1147 = vpack.c.b16 %v767, %v763
        %v1148 = vpack.c.b16 %v772, %v768
        %v1149 = vpack.c.b16 %v773, %v769
        %v1150 = vpack.c.b16 %v774, %v770
        %v1151 = vpack.c.b16 %v775, %v771
        %v1152 = vpack.c.b16 %v780, %v776
        %v1153 = vpack.c.b16 %v781, %v777
        %v1154 = vpack.c.b16 %v782, %v778
        %v1155 = vpack.c.b16 %v783, %v779
        %v1156 = vpack.c.b16 %v788, %v784
        %v1157 = vpack.c.b16 %v789, %v785
        %v1158 = vpack.c.b16 %v790, %v786
        %v1159 = vpack.c.b16 %v791, %v787
        %v1160 = vpack.c.b16 %v796, %v792
        %v1161 = vpack.c.b16 %v797, %v793
        %v1162 = vpack.c.b16 %v798, %v794
        %v1163 = vpack.c.b16 %v799, %v795
        %v1164 = vpack.c.b16 %v804, %v800
        %v1165 = vpack.c.b16 %v805, %v801
        %v1166 = vpack.c.b16 %v806, %v802
        %v1167 = vpack.c.b16 %v807, %v803
        %v1168 = vpack.c.b16 %v812, %v808
        %v1169 = vpack.c.b16 %v813, %v809
        %v1170 = vpack.c.b16 %v814, %v810
        %v1171 = vpack.c.b16 %v815, %v811
        %v1172 = vpack.c.b16 %v820, %v816
        %v1173 = vpack.c.b16 %v821, %v817
        %v1174 = vpack.c.b16 %v822, %v818
        %v1175 = vpack.c.b16 %v823, %v819
        %v1176 = vpack.c.b16 %v828, %v824
        %v1177 = vpack.c.b16 %v829, %v825
        %v1178 = vpack.c.b16 %v830, %v826
        %v1179 = vpack.c.b16 %v831, %v827
        %v1180 = vpack.c.b16 %v836, %v832
        %v1181 = vpack.c.b16 %v837, %v833
        %v1182 = vpack.c.b16 %v838, %v834
        %v1183 = vpack.c.b16 %v839, %v835
        %v1184 = vpack.c.b16 %v844, %v840
        %v1185 = vpack.c.b16 %v845, %v841
        %v1186 = vpack.c.b16 %v846, %v842
        %v1187 = vpack.c.b16 %v847, %v843
        %v1188 = vpack.c.b16 %v852, %v848
        %v1189 = vpack.c.b16 %v853, %v849
        %v1190 = vpack.c.b16 %v854, %v850
        %v1191 = vpack.c.b16 %v855, %v851
        %v1192 = vpack.c.b16 %v860, %v856
        %v1193 = vpack.c.b16 %v861, %v857
        %v1194 = vpack.c.b16 %v862, %v858
        %v1195 = vpack.c.b16 %v863, %v859
        %v1196 = vpack.c.b16 %v868, %v864
        %v1197 = vpack.c.b16 %v869, %v865
        %v1198 = vpack.c.b16 %v870, %v866
        %v1199 = vpack.c.b16 %v871, %v867
        %v1200 = vpack.c.b16 %v876, %v872
        %v1201 = vpack.c.b16 %v877, %v873
        %v1202 = vpack.c.b16 %v878, %v874
        %v1203 = vpack.c.b16 %v879, %v875
        %v1204 = vpack.c.b16 %v884, %v880
        %v1205 = vpack.c.b16 %v885, %v881
        %v1206 = vpack.c.b16 %v886, %v882
        %v1207 = vpack.c.b16 %v887, %v883
        %v1208 = vpack.c.b16 %v892, %v888
        %v1209 = vpack.c.b16 %v893, %v889
        %v1210 = vpack.c.b16 %v894, %v890
        %v1211 = vpack.c.b16 %v895, %v891
        %v1212 = vpack.c.b16 %v900, %v896
        %v1213 = vpack.c.b16 %v901, %v897
        %v1214 = vpack.c.b16 %v902, %v898
        %v1215 = vpack.c.b16 %v903, %v899
        %v1216 = vpack.c.b16 %v908, %v904
        %v1217 = vpack.c.b16 %v909, %v905
        %v1218 = vpack.c.b16 %v910, %v906
        %v1219 = vpack.c.b16 %v911, %v907
        %v1220 = vpack.c.b16 %v916, %v912
        %v1221 = vpack.c.b16 %v917, %v913
        %v1222 = vpack.c.b16 %v918, %v914
        %v1223 = vpack.c.b16 %v919, %v915
        %v1224 = vpack.c.b16 %v924, %v920
        %v1225 = vpack.c.b16 %v925, %v921
        %v1226 = vpack.c.b16 %v926, %v922
        %v1227 = vpack.c.b16 %v927, %v923
        %v1228 = vpack.c.b16 %v932, %v928
        %v1229 = vpack.c.b16 %v933, %v929
        %v1230 = vpack.c.b16 %v934, %v930
        %v1231 = vpack.c.b16 %v935, %v931
        %v1232 = vpack.c.b16 %v940, %v936
        %v1233 = vpack.c.b16 %v941, %v937
        %v1234 = vpack.c.b16 %v942, %v938
        %v1235 = vpack.c.b16 %v943, %v939
        %v1236 = vpack.c.b16 %v948, %v944
        %v1237 = vpack.c.b16 %v949, %v945
        %v1238 = vpack.c.b16 %v950, %v946
        %v1239 = vpack.c.b16 %v951, %v947
        %v1240 = vpack.c.b16 %v956, %v952
        %v1241 = vpack.c.b16 %v957, %v953
        %v1242 = vpack.c.b16 %v958, %v954
        %v1243 = vpack.c.b16 %v959, %v955
        %v1244 = vpack.c.b16 %v964, %v960
        %v1245 = vpack.c.b16 %v965, %v961
        %v1246 = vpack.c.b16 %v966, %v962
        %v1247 = vpack.c.b16 %v967, %v963
        %v1248 = vpack.c.b16 %v972, %v968
        %v1249 = vpack.c.b16 %v973, %v969
        %v1250 = vpack.c.b16 %v974, %v970
        %v1251 = vpack.c.b16 %v975, %v971
        %v1252 = vpack.c.b16 %v980, %v976
        %v1253 = vpack.c.b16 %v981, %v977
        %v1254 = vpack.c.b16 %v982, %v978
        %v1255 = vpack.c.b16 %v983, %v979
        %v1256 = vpack.c.b16 %v988, %v984
        %v1257 = vpack.c.b16 %v989, %v985
        %v1258 = vpack.c.b16 %v990, %v986
        %v1259 = vpack.c.b16 %v991, %v987
        %v1260 = vpack.c.b16 %v996, %v992
        %v1261 = vpack.c.b16 %v997, %v993
        %v1262 = vpack.c.b16 %v998, %v994
        %v1263 = vpack.c.b16 %v999, %v995
        %v1264 = vpack.c.b16 %v1004, %v1000
        %v1265 = vpack.c.b16 %v1005, %v1001
        %v1266 = vpack.c.b16 %v1006, %v1002
        %v1267 = vpack.c.b16 %v1007, %v1003
        %v1268 = vpack.c.b16 %v1012, %v1008
        %v1269 = vpack.c.b16 %v1013, %v1009
        %v1270 = vpack.c.b16 %v1014, %v1010
        %v1271 = vpack.c.b16 %v1015, %v1011
        %v1272 = vpack.c.b16 %v1020, %v1016
        %v1273 = vpack.c.b16 %v1021, %v1017
        %v1274 = vpack.c.b16 %v1022, %v1018
        %v1275 = vpack.c.b16 %v1023, %v1019
        %v1276 = vpack.c.b16 %v1028, %v1024
        %v1277 = vpack.c.b16 %v1029, %v1025
        %v1278 = vpack.c.b16 %v1030, %v1026
        %v1279 = vpack.c.b16 %v1031, %v1027
        %v1280 = vpack.c.b16 %v1036, %v1032
        %v1281 = vpack.c.b16 %v1037, %v1033
        %v1282 = vpack.c.b16 %v1038, %v1034
        %v1283 = vpack.c.b16 %v1039, %v1035
        %v1284 = vpack.c.b16 %v1044, %v1040
        %v1285 = vpack.c.b16 %v1045, %v1041
        %v1286 = vpack.c.b16 %v1046, %v1042
        %v1287 = vpack.c.b16 %v1047, %v1043
        %v1288 = vpack.c.b16 %v1052, %v1048
        %v1289 = vpack.c.b16 %v1053, %v1049
        %v1290 = vpack.c.b16 %v1054, %v1050
        %v1291 = vpack.c.b16 %v1055, %v1051
        %v1292 = vpack.c.b16 %v1060, %v1056
        %v1293 = vpack.c.b16 %v1061, %v1057
        %v1294 = vpack.c.b16 %v1062, %v1058
        %v1295 = vpack.c.b16 %v1063, %v1059
        %v1296 = vpack.c.b16 %v1068, %v1064
        %v1297 = vpack.c.b16 %v1069, %v1065
        %v1298 = vpack.c.b16 %v1070, %v1066
        %v1299 = vpack.c.b16 %v1071, %v1067
        %v1300 = vpack.c.b16 %v1076, %v1072
        %v1301 = vpack.c.b16 %v1077, %v1073
        %v1302 = vpack.c.b16 %v1078, %v1074
        %v1303 = vpack.c.b16 %v1079, %v1075
        %v1304 = vpack.c.b16 %v1084, %v1080
        %v1305 = vpack.c.b16 %v1085, %v1081
        %v1306 = vpack.c.b16 %v1086, %v1082
        %v1307 = vpack.c.b16 %v1087, %v1083
        %v1308 = vpack.c.b16 %v1092, %v1088
        %v1309 = vpack.c.b16 %v1093, %v1089
        %v1310 = vpack.c.b16 %v1094, %v1090
        %v1311 = vpack.c.b16 %v1095, %v1091
        %v1312 = vpack.c.b16 %v1100, %v1096
        %v1313 = vpack.c.b16 %v1101, %v1097
        %v1314 = vpack.c.b16 %v1102, %v1098
        %v1315 = vpack.c.b16 %v1103, %v1099
        %v1316 = vpack.c.b16 %v1108, %v1104
        %v1317 = vpack.c.b16 %v1109, %v1105
        %v1318 = vpack.c.b16 %v1110, %v1106
        %v1319 = vpack.c.b16 %v1111, %v1107
        %v1320 = vpack.c.b16 %v1116, %v1112
        %v1321 = vpack.c.b16 %v1117, %v1113
        %v1322 = vpack.c.b16 %v1118, %v1114
        %v1323 = vpack.c.b16 %v1119, %v1115
        %v1324 = vpack.c.b16 %v1124, %v1120
        %v1325 = vpack.c.b16 %v1125, %v1121
        %v1326 = vpack.c.b16 %v1126, %v1122
        %v1327 = vpack.c.b16 %v1127, %v1123
        %v1328 = vpack.c.b16 %v1132, %v1128
        %v1329 = vpack.c.b16 %v1133, %v1129
        %v1330 = vpack.c.b16 %v1134, %v1130
        %v1331 = vpack.c.b16 %v1135, %v1131
        %vm1528 = vcmask 130048
        %v1530 = vsel %vm1528, %v322, 0
        %v1533 = vsel %vm1528, %v329, 0
        %1535 = vmatprep.subr.bf16.mxu0 %v1137
        %1536 = vmatpush1.bf16.msra.mxu0 %v1136
        %1537 = vmatprep.subr.bf16.mxu0 %v1141
        %1538 = vmatpush1.bf16.msra.mxu0 %v1140
        %1539 = vmatprep.subr.bf16.mxu0 %v1145
        %1540 = vmatpush1.bf16.msra.mxu0 %v1144
        %1541 = vmatprep.subr.bf16.mxu0 %v1149
        %1542 = vmatpush1.bf16.msra.mxu0 %v1148
        %1543 = vmatprep.subr.bf16.mxu0 %v1153
        %1544 = vmatpush1.bf16.msra.mxu0 %v1152
        %1545 = vmatprep.subr.bf16.mxu0 %v1157
        %1546 = vmatpush1.bf16.msra.mxu0 %v1156
        %1547 = vmatprep.subr.bf16.mxu0 %v1161
        %1548 = vmatpush1.bf16.msra.mxu0 %v1160
        %1549 = vmatprep.subr.bf16.mxu0 %v1165
        %1550 = vmatpush1.bf16.msra.mxu0 %v1164
        %1551 = vmatprep.subr.bf16.mxu0 %v1169
        %1552 = vmatpush1.bf16.msra.mxu0 %v1168
        %1553 = vmatprep.subr.bf16.mxu0 %v1173
        %1554 = vmatpush1.bf16.msra.mxu0 %v1172
        %1555 = vmatprep.subr.bf16.mxu0 %v1177
        %1556 = vmatpush1.bf16.msra.mxu0 %v1176
        %1557 = vmatprep.subr.bf16.mxu0 %v1181
        %1558 = vmatpush1.bf16.msra.mxu0 %v1180
        %1559 = vmatprep.subr.bf16.mxu0 %v1185
        %1560 = vmatpush1.bf16.msra.mxu0 %v1184
        %1561 = vmatprep.subr.bf16.mxu0 %v1189
        %1562 = vmatpush1.bf16.msra.mxu0 %v1188
        %1563 = vmatprep.subr.bf16.mxu0 %v1193
        %1564 = vmatpush1.bf16.msra.mxu0 %v1192
        %1565 = vmatprep.subr.bf16.mxu0 %v1197
        %1566 = vmatpush1.bf16.msra.mxu0 %v1196
        %1567 = vmatprep.mubr.bf16.mxu0 %v317
        %1568 = vmatmul.mubr.bf16.gmra.mrb[0].mxu0 %v316
        %v1569 = vpop.f32.mrb[0].mxu0
        %v1570 = vadd.f32 %v531, %v1569
        %v1571 = vpop.f32.mrb[0].mxu0
        %v1572 = vadd.f32 %v535, %v1571
        %v1573 = vpop.f32.mrb[0].mxu0
        %v1574 = vadd.f32 %v531, %v1573
        %v1575 = vpop.f32.mrb[0].mxu0
        %v1576 = vadd.f32 %v535, %v1575
        %1577 = vmatprep.mubr.bf16.mxu0 %v324
        %1578 = vmatmul.mubr.bf16.gmra.mrb[0].mxu0 %v323
        %v1579 = vpop.f32.mrb[0].mxu0
        %v1580 = vadd.f32 %v531, %v1579
        %v1581 = vpop.f32.mrb[0].mxu0
        %v1582 = vadd.f32 %v535, %v1581
        %v1583 = vpop.f32.mrb[0].mxu0
        %v1584 = vadd.f32 %v531, %v1583
        %v1585 = vpop.f32.mrb[0].mxu0
        %v1586 = vadd.f32 %v535, %v1585
        %1587 = vdwg.mxu0
        %1588 = vmatprep.subr.bf16.mxu0 %v1201
        %1589 = vmatpush1.bf16.msra.mxu0 %v1200
        %1590 = vmatprep.subr.bf16.mxu0 %v1205
        %1591 = vmatpush1.bf16.msra.mxu0 %v1204
        %1592 = vmatprep.subr.bf16.mxu0 %v1209
        %1593 = vmatpush1.bf16.msra.mxu0 %v1208
        %1594 = vmatprep.subr.bf16.mxu0 %v1213
        %1595 = vmatpush1.bf16.msra.mxu0 %v1212
        %1596 = vmatprep.subr.bf16.mxu0 %v1217
        %1597 = vmatpush1.bf16.msra.mxu0 %v1216
        %1598 = vmatprep.subr.bf16.mxu0 %v1221
        %1599 = vmatpush1.bf16.msra.mxu0 %v1220
        %1600 = vmatprep.subr.bf16.mxu0 %v1225
        %1601 = vmatpush1.bf16.msra.mxu0 %v1224
        %1602 = vmatprep.subr.bf16.mxu0 %v1229
        %1603 = vmatpush1.bf16.msra.mxu0 %v1228
        %1604 = vmatprep.subr.bf16.mxu0 %v1233
        %1605 = vmatpush1.bf16.msra.mxu0 %v1232
        %1606 = vmatprep.subr.bf16.mxu0 %v1237
        %1607 = vmatpush1.bf16.msra.mxu0 %v1236
        %1608 = vmatprep.subr.bf16.mxu0 %v1241
        %1609 = vmatpush1.bf16.msra.mxu0 %v1240
        %1610 = vmatprep.subr.bf16.mxu0 %v1245
        %1611 = vmatpush1.bf16.msra.mxu0 %v1244
        %1612 = vmatprep.subr.bf16.mxu0 %v1249
        %1613 = vmatpush1.bf16.msra.mxu0 %v1248
        %1614 = vmatprep.subr.bf16.mxu0 %v1253
        %1615 = vmatpush1.bf16.msra.mxu0 %v1252
        %1616 = vmatprep.subr.bf16.mxu0 %v1257
        %1617 = vmatpush1.bf16.msra.mxu0 %v1256
        %1618 = vmatprep.subr.bf16.mxu0 %v1261
        %1619 = vmatpush1.bf16.msra.mxu0 %v1260
        %1620 = vmatprep.mubr.bf16.mxu0 %v319
        %1621 = vmatmul.mubr.bf16.gmra.mrb[0].mxu0 %v318
        %v1622 = vpop.f32.mrb[0].mxu0
        %v1623 = vadd.f32 %v1570, %v1622
        %v1624 = vpop.f32.mrb[0].mxu0
        %v1625 = vadd.f32 %v1572, %v1624
        %v1626 = vpop.f32.mrb[0].mxu0
        %v1627 = vadd.f32 %v1574, %v1626
        %v1628 = vpop.f32.mrb[0].mxu0
        %v1629 = vadd.f32 %v1576, %v1628
        %1630 = vmatprep.mubr.bf16.mxu0 %v326
        %1631 = vmatmul.mubr.bf16.gmra.mrb[0].mxu0 %v325
        %v1632 = vpop.f32.mrb[0].mxu0
        %v1633 = vadd.f32 %v1580, %v1632
        %v1634 = vpop.f32.mrb[0].mxu0
        %v1635 = vadd.f32 %v1582, %v1634
        %v1636 = vpop.f32.mrb[0].mxu0
        %v1637 = vadd.f32 %v1584, %v1636
        %v1638 = vpop.f32.mrb[0].mxu0
        %v1639 = vadd.f32 %v1586, %v1638
        %1640 = vdwg.mxu0
        %1641 = vmatprep.subr.bf16.mxu0 %v1265
        %1642 = vmatpush1.bf16.msra.mxu0 %v1264
        %1643 = vmatprep.subr.bf16.mxu0 %v1269
        %1644 = vmatpush1.bf16.msra.mxu0 %v1268
        %1645 = vmatprep.subr.bf16.mxu0 %v1273
        %1646 = vmatpush1.bf16.msra.mxu0 %v1272
        %1647 = vmatprep.subr.bf16.mxu0 %v1277
        %1648 = vmatpush1.bf16.msra.mxu0 %v1276
        %1649 = vmatprep.subr.bf16.mxu0 %v1281
        %1650 = vmatpush1.bf16.msra.mxu0 %v1280
        %1651 = vmatprep.subr.bf16.mxu0 %v1285
        %1652 = vmatpush1.bf16.msra.mxu0 %v1284
        %1653 = vmatprep.subr.bf16.mxu0 %v1289
        %1654 = vmatpush1.bf16.msra.mxu0 %v1288
        %1655 = vmatprep.subr.bf16.mxu0 %v1293
        %1656 = vmatpush1.bf16.msra.mxu0 %v1292
        %1657 = vmatprep.subr.bf16.mxu0 %v1297
        %1658 = vmatpush1.bf16.msra.mxu0 %v1296
        %1659 = vmatprep.subr.bf16.mxu0 %v1301
        %1660 = vmatpush1.bf16.msra.mxu0 %v1300
        %1661 = vmatprep.subr.bf16.mxu0 %v1305
        %1662 = vmatpush1.bf16.msra.mxu0 %v1304
        %1663 = vmatprep.subr.bf16.mxu0 %v1309
        %1664 = vmatpush1.bf16.msra.mxu0 %v1308
        %1665 = vmatprep.subr.bf16.mxu0 %v1313
        %1666 = vmatpush1.bf16.msra.mxu0 %v1312
        %1667 = vmatprep.subr.bf16.mxu0 %v1317
        %1668 = vmatpush1.bf16.msra.mxu0 %v1316
        %1669 = vmatprep.subr.bf16.mxu0 %v1321
        %1670 = vmatpush1.bf16.msra.mxu0 %v1320
        %1671 = vmatprep.subr.bf16.mxu0 %v1325
        %1672 = vmatpush1.bf16.msra.mxu0 %v1324
        %1673 = vmatprep.mubr.bf16.mxu0 %v321
        %1674 = vmatmul.mubr.bf16.gmra.mrb[0].mxu0 %v320
        %v1675 = vpop.f32.mrb[0].mxu0
        %v1676 = vadd.f32 %v1623, %v1675
        %v1677 = vpop.f32.mrb[0].mxu0
        %v1678 = vadd.f32 %v1625, %v1677
        %v1679 = vpop.f32.mrb[0].mxu0
        %v1680 = vadd.f32 %v1627, %v1679
        %v1681 = vpop.f32.mrb[0].mxu0
        %v1682 = vadd.f32 %v1629, %v1681
        %1683 = vmatprep.mubr.bf16.mxu0 %v328
        %1684 = vmatmul.mubr.bf16.gmra.mrb[0].mxu0 %v327
        %v1685 = vpop.f32.mrb[0].mxu0
        %v1686 = vadd.f32 %v1633, %v1685
        %v1687 = vpop.f32.mrb[0].mxu0
        %v1688 = vadd.f32 %v1635, %v1687
        %v1689 = vpop.f32.mrb[0].mxu0
        %v1690 = vadd.f32 %v1637, %v1689
        %v1691 = vpop.f32.mrb[0].mxu0
        %v1692 = vadd.f32 %v1639, %v1691
        %1693 = vdwg.mxu0
        %1694 = vmatprep.subr.bf16.mxu0 %v1329
        %1695 = vmatpush1.bf16.msra.mxu0 %v1328
        %1696 = vmatprep.subr.bf16.mxu0 0
        %1697 = vmatpush1.bf16.msra.mxu0 0
        %1698 = vmatprep.subr.bf16.mxu0 0
        %1699 = vmatpush1.bf16.msra.mxu0 0
        %1700 = vmatprep.subr.bf16.mxu0 0
        %1701 = vmatpush1.bf16.msra.mxu0 0
        %1702 = vmatprep.subr.bf16.mxu0 0
        %1703 = vmatpush1.bf16.msra.mxu0 0
        %1704 = vmatprep.subr.bf16.mxu0 0
        %1705 = vmatpush1.bf16.msra.mxu0 0
        %1706 = vmatprep.subr.bf16.mxu0 0
        %1707 = vmatpush1.bf16.msra.mxu0 0
        %1708 = vmatprep.subr.bf16.mxu0 0
        %1709 = vmatpush1.bf16.msra.mxu0 0
        %1710 = vmatprep.subr.bf16.mxu0 0
        %1711 = vmatpush1.bf16.msra.mxu0 0
        %1712 = vmatprep.subr.bf16.mxu0 0
        %1713 = vmatpush1.bf16.msra.mxu0 0
        %1714 = vmatprep.subr.bf16.mxu0 0
        %1715 = vmatpush1.bf16.msra.mxu0 0
        %1716 = vmatprep.subr.bf16.mxu0 0
        %1717 = vmatpush1.bf16.msra.mxu0 0
        %1718 = vmatprep.subr.bf16.mxu0 0
        %1719 = vmatpush1.bf16.msra.mxu0 0
        %1720 = vmatprep.subr.bf16.mxu0 0
        %1721 = vmatpush1.bf16.msra.mxu0 0
        %1722 = vmatprep.subr.bf16.mxu0 0
        %1723 = vmatpush1.bf16.msra.mxu0 0
        %1724 = vmatprep.subr.bf16.mxu0 0
        %1725 = vmatpush1.bf16.msra.mxu0 0
        %1726 = vmatprep.mubr.bf16.mxu0 0
        %1727 = vmatmul.mubr.bf16.gmra.mrb[0].mxu0 %v1530
        %v1728 = vpop.f32.mrb[0].mxu0
        %v1729 = vadd.f32 %v1676, %v1728
        %v1730 = vpop.f32.mrb[0].mxu0
        %v1731 = vadd.f32 %v1678, %v1730
        %v1732 = vpop.f32.mrb[0].mxu0
        %v1733 = vadd.f32 %v1680, %v1732
        %v1734 = vpop.f32.mrb[0].mxu0
        %v1735 = vadd.f32 %v1682, %v1734
        %1736 = vmatprep.mubr.bf16.mxu0 0
        %1737 = vmatmul.mubr.bf16.gmra.mrb[0].mxu0 %v1533
        %v1738 = vpop.f32.mrb[0].mxu0
        %v1739 = vadd.f32 %v1686, %v1738
        %v1740 = vpop.f32.mrb[0].mxu0
        %v1741 = vadd.f32 %v1688, %v1740
        %v1742 = vpop.f32.mrb[0].mxu0
        %v1743 = vadd.f32 %v1690, %v1742
        %v1744 = vpop.f32.mrb[0].mxu0
        %v1745 = vadd.f32 %v1692, %v1744
        %1746 = vdwg.mxu0
        %1747 = vmatprep.subr.bf16.mxu0 %v1139
        %1748 = vmatpush1.bf16.msra.mxu0 %v1138
        %1749 = vmatprep.subr.bf16.mxu0 %v1143
        %1750 = vmatpush1.bf16.msra.mxu0 %v1142
        %1751 = vmatprep.subr.bf16.mxu0 %v1147
        %1752 = vmatpush1.bf16.msra.mxu0 %v1146
        %1753 = vmatprep.subr.bf16.mxu0 %v1151
        %1754 = vmatpush1.bf16.msra.mxu0 %v1150
        %1755 = vmatprep.subr.bf16.mxu0 %v1155
        %1756 = vmatpush1.bf16.msra.mxu0 %v1154
        %1757 = vmatprep.subr.bf16.mxu0 %v1159
        %1758 = vmatpush1.bf16.msra.mxu0 %v1158
        %1759 = vmatprep.subr.bf16.mxu0 %v1163
        %1760 = vmatpush1.bf16.msra.mxu0 %v1162
        %1761 = vmatprep.subr.bf16.mxu0 %v1167
        %1762 = vmatpush1.bf16.msra.mxu0 %v1166
        %1763 = vmatprep.subr.bf16.mxu0 %v1171
        %1764 = vmatpush1.bf16.msra.mxu0 %v1170
        %1765 = vmatprep.subr.bf16.mxu0 %v1175
        %1766 = vmatpush1.bf16.msra.mxu0 %v1174
        %1767 = vmatprep.subr.bf16.mxu0 %v1179
        %1768 = vmatpush1.bf16.msra.mxu0 %v1178
        %1769 = vmatprep.subr.bf16.mxu0 %v1183
        %1770 = vmatpush1.bf16.msra.mxu0 %v1182
        %1771 = vmatprep.subr.bf16.mxu0 %v1187
        %1772 = vmatpush1.bf16.msra.mxu0 %v1186
        %1773 = vmatprep.subr.bf16.mxu0 %v1191
        %1774 = vmatpush1.bf16.msra.mxu0 %v1190
        %1775 = vmatprep.subr.bf16.mxu0 %v1195
        %1776 = vmatpush1.bf16.msra.mxu0 %v1194
        %1777 = vmatprep.subr.bf16.mxu0 %v1199
        %1778 = vmatpush1.bf16.msra.mxu0 %v1198
        %1779 = vmatprep.mubr.bf16.mxu0 %v317
        %1780 = vmatmul.mubr.bf16.gmra.mrb[0].mxu0 %v316
        %v1781 = vpop.f32.mrb[0].mxu0
        %v1782 = vadd.f32 %v539, %v1781
        %v1783 = vpop.f32.mrb[0].mxu0
        %v1784 = vadd.f32 %v543, %v1783
        %v1785 = vpop.f32.mrb[0].mxu0
        %v1786 = vadd.f32 %v539, %v1785
        %v1787 = vpop.f32.mrb[0].mxu0
        %v1788 = vadd.f32 %v543, %v1787
        %1789 = vmatprep.mubr.bf16.mxu0 %v324
        %1790 = vmatmul.mubr.bf16.gmra.mrb[0].mxu0 %v323
        %v1791 = vpop.f32.mrb[0].mxu0
        %v1792 = vadd.f32 %v539, %v1791
        %v1793 = vpop.f32.mrb[0].mxu0
        %v1794 = vadd.f32 %v543, %v1793
        %v1795 = vpop.f32.mrb[0].mxu0
        %v1796 = vadd.f32 %v539, %v1795
        %v1797 = vpop.f32.mrb[0].mxu0
        %v1798 = vadd.f32 %v543, %v1797
        %1799 = vdwg.mxu0
        %1800 = vmatprep.subr.bf16.mxu0 %v1203
        %1801 = vmatpush1.bf16.msra.mxu0 %v1202
        %1802 = vmatprep.subr.bf16.mxu0 %v1207
        %1803 = vmatpush1.bf16.msra.mxu0 %v1206
        %1804 = vmatprep.subr.bf16.mxu0 %v1211
        %1805 = vmatpush1.bf16.msra.mxu0 %v1210
        %1806 = vmatprep.subr.bf16.mxu0 %v1215
        %1807 = vmatpush1.bf16.msra.mxu0 %v1214
        %1808 = vmatprep.subr.bf16.mxu0 %v1219
        %1809 = vmatpush1.bf16.msra.mxu0 %v1218
        %1810 = vmatprep.subr.bf16.mxu0 %v1223
        %1811 = vmatpush1.bf16.msra.mxu0 %v1222
        %1812 = vmatprep.subr.bf16.mxu0 %v1227
        %1813 = vmatpush1.bf16.msra.mxu0 %v1226
        %1814 = vmatprep.subr.bf16.mxu0 %v1231
        %1815 = vmatpush1.bf16.msra.mxu0 %v1230
        %1816 = vmatprep.subr.bf16.mxu0 %v1235
        %1817 = vmatpush1.bf16.msra.mxu0 %v1234
        %1818 = vmatprep.subr.bf16.mxu0 %v1239
        %1819 = vmatpush1.bf16.msra.mxu0 %v1238
        %1820 = vmatprep.subr.bf16.mxu0 %v1243
        %1821 = vmatpush1.bf16.msra.mxu0 %v1242
        %1822 = vmatprep.subr.bf16.mxu0 %v1247
        %1823 = vmatpush1.bf16.msra.mxu0 %v1246
        %1824 = vmatprep.subr.bf16.mxu0 %v1251
        %1825 = vmatpush1.bf16.msra.mxu0 %v1250
        %1826 = vmatprep.subr.bf16.mxu0 %v1255
        %1827 = vmatpush1.bf16.msra.mxu0 %v1254
        %1828 = vmatprep.subr.bf16.mxu0 %v1259
        %1829 = vmatpush1.bf16.msra.mxu0 %v1258
        %1830 = vmatprep.subr.bf16.mxu0 %v1263
        %1831 = vmatpush1.bf16.msra.mxu0 %v1262
        %1832 = vmatprep.mubr.bf16.mxu0 %v319
        %1833 = vmatmul.mubr.bf16.gmra.mrb[0].mxu0 %v318
        %v1834 = vpop.f32.mrb[0].mxu0
        %v1835 = vadd.f32 %v1782, %v1834
        %v1836 = vpop.f32.mrb[0].mxu0
        %v1837 = vadd.f32 %v1784, %v1836
        %v1838 = vpop.f32.mrb[0].mxu0
        %v1839 = vadd.f32 %v1786, %v1838
        %v1840 = vpop.f32.mrb[0].mxu0
        %v1841 = vadd.f32 %v1788, %v1840
        %1842 = vmatprep.mubr.bf16.mxu0 %v326
        %1843 = vmatmul.mubr.bf16.gmra.mrb[0].mxu0 %v325
        %v1844 = vpop.f32.mrb[0].mxu0
        %v1845 = vadd.f32 %v1792, %v1844
        %v1846 = vpop.f32.mrb[0].mxu0
        %v1847 = vadd.f32 %v1794, %v1846
        %v1848 = vpop.f32.mrb[0].mxu0
        %v1849 = vadd.f32 %v1796, %v1848
        %v1850 = vpop.f32.mrb[0].mxu0
        %v1851 = vadd.f32 %v1798, %v1850
        %1852 = vdwg.mxu0
        %1853 = vmatprep.subr.bf16.mxu0 %v1267
        %1854 = vmatpush1.bf16.msra.mxu0 %v1266
        %1855 = vmatprep.subr.bf16.mxu0 %v1271
        %1856 = vmatpush1.bf16.msra.mxu0 %v1270
        %1857 = vmatprep.subr.bf16.mxu0 %v1275
        %1858 = vmatpush1.bf16.msra.mxu0 %v1274
        %1859 = vmatprep.subr.bf16.mxu0 %v1279
        %1860 = vmatpush1.bf16.msra.mxu0 %v1278
        %1861 = vmatprep.subr.bf16.mxu0 %v1283
        %1862 = vmatpush1.bf16.msra.mxu0 %v1282
        %1863 = vmatprep.subr.bf16.mxu0 %v1287
        %1864 = vmatpush1.bf16.msra.mxu0 %v1286
        %1865 = vmatprep.subr.bf16.mxu0 %v1291
        %1866 = vmatpush1.bf16.msra.mxu0 %v1290
        %1867 = vmatprep.subr.bf16.mxu0 %v1295
        %1868 = vmatpush1.bf16.msra.mxu0 %v1294
        %1869 = vmatprep.subr.bf16.mxu0 %v1299
        %1870 = vmatpush1.bf16.msra.mxu0 %v1298
        %1871 = vmatprep.subr.bf16.mxu0 %v1303
        %1872 = vmatpush1.bf16.msra.mxu0 %v1302
        %1873 = vmatprep.subr.bf16.mxu0 %v1307
        %1874 = vmatpush1.bf16.msra.mxu0 %v1306
        %1875 = vmatprep.subr.bf16.mxu0 %v1311
        %1876 = vmatpush1.bf16.msra.mxu0 %v1310
        %1877 = vmatprep.subr.bf16.mxu0 %v1315
        %1878 = vmatpush1.bf16.msra.mxu0 %v1314
        %1879 = vmatprep.subr.bf16.mxu0 %v1319
        %1880 = vmatpush1.bf16.msra.mxu0 %v1318
        %1881 = vmatprep.subr.bf16.mxu0 %v1323
        %1882 = vmatpush1.bf16.msra.mxu0 %v1322
        %1883 = vmatprep.subr.bf16.mxu0 %v1327
        %1884 = vmatpush1.bf16.msra.mxu0 %v1326
        %1885 = vmatprep.mubr.bf16.mxu0 %v321
        %1886 = vmatmul.mubr.bf16.gmra.mrb[0].mxu0 %v320
        %v1887 = vpop.f32.mrb[0].mxu0
        %v1888 = vadd.f32 %v1835, %v1887
        %v1889 = vpop.f32.mrb[0].mxu0
        %v1890 = vadd.f32 %v1837, %v1889
        %v1891 = vpop.f32.mrb[0].mxu0
        %v1892 = vadd.f32 %v1839, %v1891
        %v1893 = vpop.f32.mrb[0].mxu0
        %v1894 = vadd.f32 %v1841, %v1893
        %1895 = vmatprep.mubr.bf16.mxu0 %v328
        %1896 = vmatmul.mubr.bf16.gmra.mrb[0].mxu0 %v327
        %v1897 = vpop.f32.mrb[0].mxu0
        %v1898 = vadd.f32 %v1845, %v1897
        %v1899 = vpop.f32.mrb[0].mxu0
        %v1900 = vadd.f32 %v1847, %v1899
        %v1901 = vpop.f32.mrb[0].mxu0
        %v1902 = vadd.f32 %v1849, %v1901
        %v1903 = vpop.f32.mrb[0].mxu0
        %v1904 = vadd.f32 %v1851, %v1903
        %1905 = vdwg.mxu0
        %1906 = vmatprep.subr.bf16.mxu0 %v1331
        %1907 = vmatpush1.bf16.msra.mxu0 %v1330
        %1908 = vmatprep.subr.bf16.mxu0 0
        %1909 = vmatpush1.bf16.msra.mxu0 0
        %1910 = vmatprep.subr.bf16.mxu0 0
        %1911 = vmatpush1.bf16.msra.mxu0 0
        %1912 = vmatprep.subr.bf16.mxu0 0
        %1913 = vmatpush1.bf16.msra.mxu0 0
        %1914 = vmatprep.subr.bf16.mxu0 0
        %1915 = vmatpush1.bf16.msra.mxu0 0
        %1916 = vmatprep.subr.bf16.mxu0 0
        %1917 = vmatpush1.bf16.msra.mxu0 0
        %1918 = vmatprep.subr.bf16.mxu0 0
        %1919 = vmatpush1.bf16.msra.mxu0 0
        %1920 = vmatprep.subr.bf16.mxu0 0
        %1921 = vmatpush1.bf16.msra.mxu0 0
        %1922 = vmatprep.subr.bf16.mxu0 0
        %1923 = vmatpush1.bf16.msra.mxu0 0
        %1924 = vmatprep.subr.bf16.mxu0 0
        %1925 = vmatpush1.bf16.msra.mxu0 0
        %1926 = vmatprep.subr.bf16.mxu0 0
        %1927 = vmatpush1.bf16.msra.mxu0 0
        %1928 = vmatprep.subr.bf16.mxu0 0
        %1929 = vmatpush1.bf16.msra.mxu0 0
        %1930 = vmatprep.subr.bf16.mxu0 0
        %1931 = vmatpush1.bf16.msra.mxu0 0
        %1932 = vmatprep.subr.bf16.mxu0 0
        %1933 = vmatpush1.bf16.msra.mxu0 0
        %1934 = vmatprep.subr.bf16.mxu0 0
        %1935 = vmatpush1.bf16.msra.mxu0 0
        %1936 = vmatprep.subr.bf16.mxu0 0
        %1937 = vmatpush1.bf16.msra.mxu0 0
        %1938 = vmatprep.mubr.bf16.mxu0 0
        %1939 = vmatmul.mubr.bf16.gmra.mrb[0].mxu0 %v1530
        %v1940 = vpop.f32.mrb[0].mxu0
        %v1941 = vadd.f32 %v1888, %v1940
        %v1942 = vpop.f32.mrb[0].mxu0
        %v1943 = vadd.f32 %v1890, %v1942
        %v1944 = vpop.f32.mrb[0].mxu0
        %v1945 = vadd.f32 %v1892, %v1944
        %v1946 = vpop.f32.mrb[0].mxu0
        %v1947 = vadd.f32 %v1894, %v1946
        %1948 = vmatprep.mubr.bf16.mxu0 0
        %1949 = vmatmul.mubr.bf16.gmra.mrb[0].mxu0 %v1533
        %v1950 = vpop.f32.mrb[0].mxu0
        %v1951 = vadd.f32 %v1898, %v1950
        %v1952 = vpop.f32.mrb[0].mxu0
        %v1953 = vadd.f32 %v1900, %v1952
        %v1954 = vpop.f32.mrb[0].mxu0
        %v1955 = vadd.f32 %v1902, %v1954
        %v1956 = vpop.f32.mrb[0].mxu0
        %v1957 = vadd.f32 %v1904, %v1956
        %1958 = vdwg.mxu0
        %vm1959 = vcmp.gt.f32.partialorder %v1729, 0.0
        %vm1960 = vcmp.gt.f32.partialorder %v1731, 0.0
        %vm1961 = vcmp.gt.f32.partialorder %v1941, 0.0
        %vm1962 = vcmp.gt.f32.partialorder %v1943, 0.0
        %vm1963 = vcmp.gt.f32.partialorder %v1733, 0.0
        %vm1964 = vcmp.gt.f32.partialorder %v1735, 0.0
        %vm1965 = vcmp.gt.f32.partialorder %v1945, 0.0
        %vm1966 = vcmp.gt.f32.partialorder %v1947, 0.0
        %vm1967 = vcmp.gt.f32.partialorder %v1739, 0.0
        %vm1968 = vcmp.gt.f32.partialorder %v1741, 0.0
        %vm1969 = vcmp.gt.f32.partialorder %v1951, 0.0
        %vm1970 = vcmp.gt.f32.partialorder %v1953, 0.0
        %vm1971 = vcmp.gt.f32.partialorder %v1743, 0.0
        %vm1972 = vcmp.gt.f32.partialorder %v1745, 0.0
        %vm1973 = vcmp.gt.f32.partialorder %v1955, 0.0
        %vm1974 = vcmp.gt.f32.partialorder %v1957, 0.0
        %v1975 = vmul.f32 %v1729, 0.01
        %v1976 = vmul.f32 %v1731, 0.01
        %v1977 = vmul.f32 %v1941, 0.01
        %v1978 = vmul.f32 %v1943, 0.01
        %v1979 = vmul.f32 %v1733, 0.01
        %v1980 = vmul.f32 %v1735, 0.01
        %v1981 = vmul.f32 %v1945, 0.01
        %v1982 = vmul.f32 %v1947, 0.01
        %v1983 = vmul.f32 %v1739, 0.01
        %v1984 = vmul.f32 %v1741, 0.01
        %v1985 = vmul.f32 %v1951, 0.01
        %v1986 = vmul.f32 %v1953, 0.01
        %v1987 = vmul.f32 %v1743, 0.01
        %v1988 = vmul.f32 %v1745, 0.01
        %v1989 = vmul.f32 %v1955, 0.01
        %v1990 = vmul.f32 %v1957, 0.01
        %v1991 = vsel %vm1959, %v1729, %v1975
        %v1992 = vsel %vm1960, %v1731, %v1976
        %v1993 = vsel %vm1961, %v1941, %v1977
        %v1994 = vsel %vm1962, %v1943, %v1978
        %v1995 = vsel %vm1963, %v1733, %v1979
        %v1996 = vsel %vm1964, %v1735, %v1980
        %v1997 = vsel %vm1965, %v1945, %v1981
        %v1998 = vsel %vm1966, %v1947, %v1982
        %v1999 = vsel %vm1967, %v1739, %v1983
        %v2000 = vsel %vm1968, %v1741, %v1984
        %v2001 = vsel %vm1969, %v1951, %v1985
        %v2002 = vsel %vm1970, %v1953, %v1986
        %v2003 = vsel %vm1971, %v1743, %v1987
        %v2004 = vsel %vm1972, %v1745, %v1988
        %v2005 = vsel %vm1973, %v1955, %v1989
        %v2006 = vsel %vm1974, %v1957, %v1990
        %v2007 = vpack.c.bf16 %v1995, %v1991
        %v2008 = vpack.c.bf16 %v1996, %v1992
        %v2009 = vpack.c.bf16 %v1997, %v1993
        %v2010 = vpack.c.bf16 %v1998, %v1994
        %v2011 = vpack.c.bf16 %v2003, %v1999
        %v2012 = vpack.c.bf16 %v2004, %v2000
        %v2013 = vpack.c.bf16 %v2005, %v2001
        %v2014 = vpack.c.bf16 %v2006, %v2002
        %v2015 = vld [vmem:[#allocation6] sm:$0xf]
        %v2016 = vld [vmem:[#allocation6 + $0x4] sm:$0xf]
        %v2017 = vld [vmem:[#allocation6 + $0x8] sm:$0xf]
        %v2018 = vld [vmem:[#allocation6 + $0xc] sm:$0xf]
        %v2019 = vld [vmem:[#allocation6 + $0x10] sm:$0xf]
        %v2020 = vld [vmem:[#allocation6 + $0x14] sm:$0xf]
        %v2021 = vld [vmem:[#allocation6 + $0x18] sm:$0xf]
        %v2022 = vld [vmem:[#allocation6 + $0x1c] sm:$0xf]
        %v2023 = vld [vmem:[#allocation6 + $0x20] sm:$0xf]
        %v2024 = vld [vmem:[#allocation6 + $0x24] sm:$0xf]
        %v2025 = vld [vmem:[#allocation6 + $0x28] sm:$0xf]
        %v2026 = vld [vmem:[#allocation6 + $0x2c] sm:$0xf]
        %v2027 = vld [vmem:[#allocation6 + $0x30] sm:$0xf]
        %v2028 = vld [vmem:[#allocation6 + $0x34] sm:$0xf]
        %v2029 = vld [vmem:[#allocation6 + $0x38] sm:$0xf]
        %v2030 = vld [vmem:[#allocation6 + $0x3c] sm:$0xf]
        %v2031 = vld [vmem:[#allocation6 + $0x40] sm:$0xf]
        %v2032 = vld [vmem:[#allocation6 + $0x44] sm:$0xf]
        %v2033 = vld [vmem:[#allocation6 + $0x48] sm:$0xf]
        %v2034 = vld [vmem:[#allocation6 + $0x4c] sm:$0xf]
        %v2035 = vld [vmem:[#allocation6 + $0x50] sm:$0xf]
        %v2036 = vld [vmem:[#allocation6 + $0x54] sm:$0xf]
        %v2037 = vld [vmem:[#allocation6 + $0x58] sm:$0xf]
        %v2038 = vld [vmem:[#allocation6 + $0x5c] sm:$0xf]
        %v2039 = vld [vmem:[#allocation6 + $0x60] sm:$0xf]
        %v2040 = vld [vmem:[#allocation6 + $0x64] sm:$0xf]
        %v2041 = vld [vmem:[#allocation6 + $0x68] sm:$0xf]
        %v2042 = vld [vmem:[#allocation6 + $0x6c] sm:$0xf]
        %v2043 = vld [vmem:[#allocation6 + $0x70] sm:$0xf]
        %v2044 = vld [vmem:[#allocation6 + $0x74] sm:$0xf]
        %v2045 = vld [vmem:[#allocation6 + $0x78] sm:$0xf]
        %v2046 = vld [vmem:[#allocation6 + $0x7c] sm:$0xf]
        %v2047 = vld [vmem:[#allocation6 + $0x80] sm:$0xf]
        %v2048 = vld [vmem:[#allocation6 + $0x84] sm:$0xf]
        %v2049 = vld [vmem:[#allocation6 + $0x88] sm:$0xf]
        %v2050 = vld [vmem:[#allocation6 + $0x8c] sm:$0xf]
        %v2051 = vld [vmem:[#allocation6 + $0x90] sm:$0xf]
        %v2052 = vld [vmem:[#allocation6 + $0x94] sm:$0xf]
        %v2053 = vld [vmem:[#allocation6 + $0x98] sm:$0xf]
        %v2054 = vld [vmem:[#allocation6 + $0x9c] sm:$0xf]
        %v2055 = vld [vmem:[#allocation6 + $0xa0] sm:$0xf]
        %v2056 = vld [vmem:[#allocation6 + $0xa4] sm:$0xf]
        %v2057 = vld [vmem:[#allocation6 + $0xa8] sm:$0xf]
        %v2058 = vld [vmem:[#allocation6 + $0xac] sm:$0xf]
        %v2059 = vld [vmem:[#allocation6 + $0xb0] sm:$0xf]
        %v2060 = vld [vmem:[#allocation6 + $0xb4] sm:$0xf]
        %v2061 = vld [vmem:[#allocation6 + $0xb8] sm:$0xf]
        %v2062 = vld [vmem:[#allocation6 + $0xbc] sm:$0xf]
        %v2063 = vld [vmem:[#allocation6 + $0xc0] sm:$0xf]
        %v2064 = vld [vmem:[#allocation6 + $0xc4] sm:$0xf]
        %v2065 = vld [vmem:[#allocation6 + $0xc8] sm:$0xf]
        %v2066 = vld [vmem:[#allocation6 + $0xcc] sm:$0xf]
        %v2067 = vld [vmem:[#allocation6 + $0xd0] sm:$0xf]
        %v2068 = vld [vmem:[#allocation6 + $0xd4] sm:$0xf]
        %v2069 = vld [vmem:[#allocation6 + $0xd8] sm:$0xf]
        %v2070 = vld [vmem:[#allocation6 + $0xdc] sm:$0xf]
        %v2071 = vld [vmem:[#allocation6 + $0xe0] sm:$0xf]
        %v2072 = vld [vmem:[#allocation6 + $0xe4] sm:$0xf]
        %v2073 = vld [vmem:[#allocation6 + $0xe8] sm:$0xf]
        %v2074 = vld [vmem:[#allocation6 + $0xec] sm:$0xf]
        %v2075 = vld [vmem:[#allocation6 + $0xf0] sm:$0xf]
        %v2076 = vld [vmem:[#allocation6 + $0xf4] sm:$0xf]
        %v2077 = vld [vmem:[#allocation6 + $0xf8] sm:$0xf]
        %v2078 = vld [vmem:[#allocation6 + $0xfc] sm:$0xf]
        %v2079 = vld [vmem:[%s4] sm:$0x1]
        %v2081 = vlaneseq
        %v2082 = vshrl.u32 %v2081, 7
        %v2083 = vsub.s32 0, %v2082
        %v2084 = vrot.slane %v2079, %v2083
        %v2150 = vunpack.c.l.b16 %v2015
        %v2151 = vunpack.c.l.b16 %v2016
        %v2152 = vunpack.c.l.b16 %v2017
        %v2153 = vunpack.c.l.b16 %v2018
        %v2154 = vunpack.c.l.b16 %v2019
        %v2155 = vunpack.c.l.b16 %v2020
        %v2156 = vunpack.c.l.b16 %v2021
        %v2157 = vunpack.c.l.b16 %v2022
        %v2158 = vunpack.c.l.b16 %v2023
        %v2159 = vunpack.c.l.b16 %v2024
        %v2160 = vunpack.c.l.b16 %v2025
        %v2161 = vunpack.c.l.b16 %v2026
        %v2162 = vunpack.c.l.b16 %v2027
        %v2163 = vunpack.c.l.b16 %v2028
        %v2164 = vunpack.c.l.b16 %v2029
        %v2165 = vunpack.c.l.b16 %v2030
        %v2166 = vunpack.c.l.b16 %v2031
        %v2167 = vunpack.c.l.b16 %v2032
        %v2168 = vunpack.c.l.b16 %v2033
        %v2169 = vunpack.c.l.b16 %v2034
        %v2170 = vunpack.c.l.b16 %v2035
        %v2171 = vunpack.c.l.b16 %v2036
        %v2172 = vunpack.c.l.b16 %v2037
        %v2173 = vunpack.c.l.b16 %v2038
        %v2174 = vunpack.c.l.b16 %v2039
        %v2175 = vunpack.c.l.b16 %v2040
        %v2176 = vunpack.c.l.b16 %v2041
        %v2177 = vunpack.c.l.b16 %v2042
        %v2178 = vunpack.c.l.b16 %v2043
        %v2179 = vunpack.c.l.b16 %v2044
        %v2180 = vunpack.c.l.b16 %v2045
        %v2181 = vunpack.c.l.b16 %v2046
        %v2182 = vunpack.c.l.b16 %v2047
        %v2183 = vunpack.c.l.b16 %v2048
        %v2184 = vunpack.c.l.b16 %v2049
        %v2185 = vunpack.c.l.b16 %v2050
        %v2186 = vunpack.c.l.b16 %v2051
        %v2187 = vunpack.c.l.b16 %v2052
        %v2188 = vunpack.c.l.b16 %v2053
        %v2189 = vunpack.c.l.b16 %v2054
        %v2190 = vunpack.c.l.b16 %v2055
        %v2191 = vunpack.c.l.b16 %v2056
        %v2192 = vunpack.c.l.b16 %v2057
        %v2193 = vunpack.c.l.b16 %v2058
        %v2194 = vunpack.c.l.b16 %v2059
        %v2195 = vunpack.c.l.b16 %v2060
        %v2196 = vunpack.c.l.b16 %v2061
        %v2197 = vunpack.c.l.b16 %v2062
        %v2198 = vunpack.c.l.b16 %v2063
        %v2199 = vunpack.c.l.b16 %v2064
        %v2200 = vunpack.c.l.b16 %v2065
        %v2201 = vunpack.c.l.b16 %v2066
        %v2202 = vunpack.c.l.b16 %v2067
        %v2203 = vunpack.c.l.b16 %v2068
        %v2204 = vunpack.c.l.b16 %v2069
        %v2205 = vunpack.c.l.b16 %v2070
        %v2206 = vunpack.c.l.b16 %v2071
        %v2207 = vunpack.c.l.b16 %v2072
        %v2208 = vunpack.c.l.b16 %v2073
        %v2209 = vunpack.c.l.b16 %v2074
        %v2210 = vunpack.c.l.b16 %v2075
        %v2211 = vunpack.c.l.b16 %v2076
        %v2212 = vunpack.c.l.b16 %v2077
        %v2213 = vunpack.c.l.b16 %v2078
        %v2214 = vpack.c.b16 %v2151, %v2150
        %v2215 = vpack.c.b16 %v2153, %v2152
        %v2216 = vpack.c.b16 %v2155, %v2154
        %v2217 = vpack.c.b16 %v2157, %v2156
        %v2218 = vpack.c.b16 %v2159, %v2158
        %v2219 = vpack.c.b16 %v2161, %v2160
        %v2220 = vpack.c.b16 %v2163, %v2162
        %v2221 = vpack.c.b16 %v2165, %v2164
        %v2222 = vpack.c.b16 %v2167, %v2166
        %v2223 = vpack.c.b16 %v2169, %v2168
        %v2224 = vpack.c.b16 %v2171, %v2170
        %v2225 = vpack.c.b16 %v2173, %v2172
        %v2226 = vpack.c.b16 %v2175, %v2174
        %v2227 = vpack.c.b16 %v2177, %v2176
        %v2228 = vpack.c.b16 %v2179, %v2178
        %v2229 = vpack.c.b16 %v2181, %v2180
        %v2230 = vpack.c.b16 %v2183, %v2182
        %v2231 = vpack.c.b16 %v2185, %v2184
        %v2232 = vpack.c.b16 %v2187, %v2186
        %v2233 = vpack.c.b16 %v2189, %v2188
        %v2234 = vpack.c.b16 %v2191, %v2190
        %v2235 = vpack.c.b16 %v2193, %v2192
        %v2236 = vpack.c.b16 %v2195, %v2194
        %v2237 = vpack.c.b16 %v2197, %v2196
        %v2238 = vpack.c.b16 %v2199, %v2198
        %v2239 = vpack.c.b16 %v2201, %v2200
        %v2240 = vpack.c.b16 %v2203, %v2202
        %v2241 = vpack.c.b16 %v2205, %v2204
        %v2242 = vpack.c.b16 %v2207, %v2206
        %v2243 = vpack.c.b16 %v2209, %v2208
        %v2244 = vpack.c.b16 %v2211, %v2210
        %v2245 = vpack.c.b16 %v2213, %v2212
        %2278 = vmatprep.subr.bf16.mxu0 0
        %2279 = vmatpush1.bf16.msra.mxu0 %v2214
        %2280 = vmatprep.subr.bf16.mxu0 0
        %2281 = vmatpush1.bf16.msra.mxu0 %v2215
        %2282 = vmatprep.subr.bf16.mxu0 0
        %2283 = vmatpush1.bf16.msra.mxu0 %v2216
        %2284 = vmatprep.subr.bf16.mxu0 0
        %2285 = vmatpush1.bf16.msra.mxu0 %v2217
        %2286 = vmatprep.subr.bf16.mxu0 0
        %2287 = vmatpush1.bf16.msra.mxu0 %v2218
        %2288 = vmatprep.subr.bf16.mxu0 0
        %2289 = vmatpush1.bf16.msra.mxu0 %v2219
        %2290 = vmatprep.subr.bf16.mxu0 0
        %2291 = vmatpush1.bf16.msra.mxu0 %v2220
        %2292 = vmatprep.subr.bf16.mxu0 0
        %2293 = vmatpush1.bf16.msra.mxu0 %v2221
        %2294 = vmatprep.subr.bf16.mxu0 0
        %2295 = vmatpush1.bf16.msra.mxu0 %v2222
        %2296 = vmatprep.subr.bf16.mxu0 0
        %2297 = vmatpush1.bf16.msra.mxu0 %v2223
        %2298 = vmatprep.subr.bf16.mxu0 0
        %2299 = vmatpush1.bf16.msra.mxu0 %v2224
        %2300 = vmatprep.subr.bf16.mxu0 0
        %2301 = vmatpush1.bf16.msra.mxu0 %v2225
        %2302 = vmatprep.subr.bf16.mxu0 0
        %2303 = vmatpush1.bf16.msra.mxu0 %v2226
        %2304 = vmatprep.subr.bf16.mxu0 0
        %2305 = vmatpush1.bf16.msra.mxu0 %v2227
        %2306 = vmatprep.subr.bf16.mxu0 0
        %2307 = vmatpush1.bf16.msra.mxu0 %v2228
        %2308 = vmatprep.subr.bf16.mxu0 0
        %2309 = vmatpush1.bf16.msra.mxu0 %v2229
        %2310 = vmatprep.mubr.bf16.mxu0 %v2008
        %2311 = vmatmul.mubr.bf16.gmra.mrb[0].mxu0 %v2007
        %v2312 = vpop.f32.mrb[0].mxu0
        %v2313 = vadd.f32 %v2084, %v2312
        %v2314 = vpop.f32.mrb[0].mxu0
        %v2315 = vpop.f32.mrb[0].mxu0
        %v2316 = vadd.f32 %v2084, %v2315
        %v2317 = vpop.f32.mrb[0].mxu0
        %2318 = vmatprep.mubr.bf16.mxu0 %v2012
        %2319 = vmatmul.mubr.bf16.gmra.mrb[0].mxu0 %v2011
        %v2320 = vpop.f32.mrb[0].mxu0
        %v2321 = vadd.f32 %v2084, %v2320
        %v2322 = vpop.f32.mrb[0].mxu0
        %v2323 = vpop.f32.mrb[0].mxu0
        %v2324 = vadd.f32 %v2084, %v2323
        %v2325 = vpop.f32.mrb[0].mxu0
        %2326 = vdwg.mxu0
        %2327 = vmatprep.subr.bf16.mxu0 0
        %2328 = vmatpush1.bf16.msra.mxu0 %v2230
        %2329 = vmatprep.subr.bf16.mxu0 0
        %2330 = vmatpush1.bf16.msra.mxu0 %v2231
        %2331 = vmatprep.subr.bf16.mxu0 0
        %2332 = vmatpush1.bf16.msra.mxu0 %v2232
        %2333 = vmatprep.subr.bf16.mxu0 0
        %2334 = vmatpush1.bf16.msra.mxu0 %v2233
        %2335 = vmatprep.subr.bf16.mxu0 0
        %2336 = vmatpush1.bf16.msra.mxu0 %v2234
        %2337 = vmatprep.subr.bf16.mxu0 0
        %2338 = vmatpush1.bf16.msra.mxu0 %v2235
        %2339 = vmatprep.subr.bf16.mxu0 0
        %2340 = vmatpush1.bf16.msra.mxu0 %v2236
        %2341 = vmatprep.subr.bf16.mxu0 0
        %2342 = vmatpush1.bf16.msra.mxu0 %v2237
        %2343 = vmatprep.subr.bf16.mxu0 0
        %2344 = vmatpush1.bf16.msra.mxu0 %v2238
        %2345 = vmatprep.subr.bf16.mxu0 0
        %2346 = vmatpush1.bf16.msra.mxu0 %v2239
        %2347 = vmatprep.subr.bf16.mxu0 0
        %2348 = vmatpush1.bf16.msra.mxu0 %v2240
        %2349 = vmatprep.subr.bf16.mxu0 0
        %2350 = vmatpush1.bf16.msra.mxu0 %v2241
        %2351 = vmatprep.subr.bf16.mxu0 0
        %2352 = vmatpush1.bf16.msra.mxu0 %v2242
        %2353 = vmatprep.subr.bf16.mxu0 0
        %2354 = vmatpush1.bf16.msra.mxu0 %v2243
        %2355 = vmatprep.subr.bf16.mxu0 0
        %2356 = vmatpush1.bf16.msra.mxu0 %v2244
        %2357 = vmatprep.subr.bf16.mxu0 0
        %2358 = vmatpush1.bf16.msra.mxu0 %v2245
        %2359 = vmatprep.mubr.bf16.mxu0 %v2010
        %2360 = vmatmul.mubr.bf16.gmra.mrb[0].mxu0 %v2009
        %v2361 = vpop.f32.mrb[0].mxu0
        %v2362 = vadd.f32 %v2313, %v2361
        %v2363 = vpop.f32.mrb[0].mxu0
        %v2364 = vpop.f32.mrb[0].mxu0
        %v2365 = vadd.f32 %v2316, %v2364
        %v2366 = vpop.f32.mrb[0].mxu0
        %2367 = vmatprep.mubr.bf16.mxu0 %v2014
        %2368 = vmatmul.mubr.bf16.gmra.mrb[0].mxu0 %v2013
        %v2369 = vpop.f32.mrb[0].mxu0
        %v2370 = vadd.f32 %v2321, %v2369
        %v2371 = vpop.f32.mrb[0].mxu0
        %v2372 = vpop.f32.mrb[0].mxu0
        %v2373 = vadd.f32 %v2324, %v2372
        %v2374 = vpop.f32.mrb[0].mxu0
        %2375 = vdwg.mxu0
        %2376 = vst [vmem:[%s275] sm:$0xff] %v2362
        %2377 = vst [vmem:[%s275 + $0x8] sm:$0xff] %v2365
        %2378 = vst [vmem:[%s275 + $0x10] sm:$0xff] %v2370
        %2379 = vst [vmem:[%s275 + $0x18] sm:$0xff] %v2373
        %s2380 = sand.u32 %s138, 1
        %s2381 = sand.u32 %s138, 1
        %s2382 = smul.addr %s2381, 32
        %s2383 = scalar_lea.vmem [#allocation7], %s2382
        // Predicated region
        $region53: #{encoder_forward.1} parent=39 // pred_check
          %p2384 = pneg %p148
        $region54: #{encoder_forward.1} parent=39 // pred_check_branch
          %2386 = sbr.rel (%p2384) target = $region56
        $region55: #{encoder_forward.1} parent=39 // pred_region
          %s2387 = smul.u32 4, %s20
          %s2388 = ssub.s32 6, %s2387
          %p2389 = scmp.lt.s32.totalorder %s2388, 4
          %s2390 = scalar_select %p2389, %s2388, 4
          %s2391 = smul.u32 128, %s2390
          %p2392 = scmp.ne.s32.totalorder 0, %s2391
          %s2393 = smul.addr %s2387, 8
          %s2394 = scalar_lea.vmem %s5, %s2393
          // Predicated region
          $region57: #{encoder_forward.1} parent=55 // pred_check
            %p2395 = pneg %p2392
          $region58: #{encoder_forward.1} parent=55 // pred_check_branch
            %2397 = sbr.rel (%p2395) target = $region60
          $region59: #{encoder_forward.1} parent=55 // pred_region
            // Predicated region
            $region61: #{encoder_forward.1} parent=59 // pred_check
              _
            $region62: #{encoder_forward.1} parent=59 // pred_check_branch
              %2399 = sbr.rel (0) target = $region64
            $region63: #{encoder_forward.1} parent=59 // pred_region
              // Predicated region
              $region83: #{encoder_forward.1} parent=63 // pred_check
                _
              $region84: #{encoder_forward.1} parent=63 // pred_check_branch
                %2454 = sbr.rel (0) target = $region86
              $region85: #{encoder_forward.1} parent=63 // pred_region
                %s2455 = sshrl.u32 %s2390, 2
                // While loop
                $region87: #{encoder_forward.1} parent=85 // loop_pre_header
                  _
                $region88: #{encoder_forward.1} parent=85 // loop_header
                  %s2457 = sphi 0, %s2459
                  %p2458 = scmp.ge.s32.totalorder %s2457, %s2455
                  %s2462 = sphi 0, %s2475
                  %s2463 = sphi %s2383, %s2478
                  %s2464 = sphi %s2394, %s2479
                $region89: #{encoder_forward.1} parent=85 // loop_header_branch
                  %2461 = sbr.rel (%p2458) target = $region93
                $region90: #{encoder_forward.1} parent=85 // loop_body
                  %v2465 = vld [vmem:[%s2463] sm:$0xff]
                  %2466 = vst [vmem:[%s2464] sm:$0xff] %v2465
                  %v2467 = vld [vmem:[%s2463 + $0x8] sm:$0xff]
                  %2468 = vst [vmem:[%s2464 + $0x8] sm:$0xff] %v2467
                  %v2469 = vld [vmem:[%s2463 + $0x10] sm:$0xff]
                  %2470 = vst [vmem:[%s2464 + $0x10] sm:$0xff] %v2469
                  %v2471 = vld [vmem:[%s2463 + $0x18] sm:$0xff]
                  %2472 = vst [vmem:[%s2464 + $0x18] sm:$0xff] %v2471
                  %s2473 = sadd.s32 1, %s2462
                  %p2474 = scmp.ge.s32.totalorder %s2473, %s2455
                  %s2475 = scalar_select %p2474, 0, %s2473
                  %s2476 = smul.u32 %s2475, 32
                  %s2477 = smul.u32 %s2475, 32
                  %s2478 = scalar_lea.vmem %s2383, %s2476 [#allocation7]
                  %s2479 = scalar_lea.vmem %s2394, %s2477
                $region91: #{encoder_forward.1} parent=85 // loop_footer
                  %s2459 = sadd.s32 %s2457, 1
                $region92: #{encoder_forward.1} parent=85 // loop_footer_branch
                  %2456 = sbr.rel target = $region88
                $region93: #{encoder_forward.1} parent=85 // loop_exit
                  _
                %s2480 = sshrl.u32 %s2390, 2
                %s2481 = sand.u32 %s2390, 3
                %s2482 = smul.u32 %s2480, 4
                %s2483 = smul.u32 8, %s2482
                %s2484 = scalar_lea.vmem %s2383, %s2483 [#allocation7]
                %s2485 = smul.u32 8, %s2482
                %s2486 = scalar_lea.vmem %s2394, %s2485
                // While loop
                $region94: #{encoder_forward.1} parent=85 // loop_pre_header
                  _
                $region95: #{encoder_forward.1} parent=85 // loop_header
                  %s2488 = sphi 0, %s2490
                  %p2489 = scmp.ge.s32.totalorder %s2488, %s2481
                  %s2493 = sphi 0, %s2500
                  %s2494 = sphi %s2484, %s2503
                  %s2495 = sphi %s2486, %s2504
                $region96: #{encoder_forward.1} parent=85 // loop_header_branch
                  %2492 = sbr.rel (%p2489) target = $region100
                $region97: #{encoder_forward.1} parent=85 // loop_body
                  %v2496 = vld [vmem:[%s2494] sm:$0xff]
                  %2497 = vst [vmem:[%s2495] sm:$0xff] %v2496
                  %s2498 = sadd.s32 1, %s2493
                  %p2499 = scmp.ge.s32.totalorder %s2498, %s2481
                  %s2500 = scalar_select %p2499, 0, %s2498
                  %s2501 = smul.u32 %s2500, 8
                  %s2502 = smul.u32 %s2500, 8
                  %s2503 = scalar_lea.vmem %s2484, %s2501 [#allocation7]
                  %s2504 = scalar_lea.vmem %s2486, %s2502
                $region98: #{encoder_forward.1} parent=85 // loop_footer
                  %s2490 = sadd.s32 %s2488, 1
                $region99: #{encoder_forward.1} parent=85 // loop_footer_branch
                  %2487 = sbr.rel target = $region95
                $region100: #{encoder_forward.1} parent=85 // loop_exit
                  _
              $region86: #{encoder_forward.1} parent=63 // pred_fallthru
                _
              // Predicated region
              $region101: #{encoder_forward.1} parent=63 // pred_check
                _
              $region102: #{encoder_forward.1} parent=63 // pred_check_branch
                %2506 = sbr.rel target = $region104
              $region103: #{encoder_forward.1} parent=63 // pred_region
                _
              $region104: #{encoder_forward.1} parent=63 // pred_fallthru
                _
            $region64: #{encoder_forward.1} parent=59 // pred_fallthru
              _
            // Predicated region
            $region65: #{encoder_forward.1} parent=59 // pred_check
              _
            $region66: #{encoder_forward.1} parent=59 // pred_check_branch
              %2401 = sbr.rel target = $region68
            $region67: #{encoder_forward.1} parent=59 // pred_region
              %s2403 = sshrl.u32 %s2390, 2
              // While loop
              $region69: #{encoder_forward.1} parent=67 // loop_pre_header
                _
              $region70: #{encoder_forward.1} parent=67 // loop_header
                %s2405 = sphi 0, %s2407
                %p2406 = scmp.ge.s32.totalorder %s2405, %s2403
                %s2410 = sphi 0, %s2423
                %s2411 = sphi %s2383, %s2426
                %s2412 = sphi %s2394, %s2427
              $region71: #{encoder_forward.1} parent=67 // loop_header_branch
                %2409 = sbr.rel (%p2406) target = $region75
              $region72: #{encoder_forward.1} parent=67 // loop_body
                %v2413 = vld [vmem:[%s2411] sm:$0xff]
                %2414 = vst [vmem:[%s2412] sm:$0xff] %v2413
                %v2415 = vld [vmem:[%s2411 + $0x8] sm:$0xff]
                %2416 = vst [vmem:[%s2412 + $0x8] sm:$0xff] %v2415
                %v2417 = vld [vmem:[%s2411 + $0x10] sm:$0xff]
                %2418 = vst [vmem:[%s2412 + $0x10] sm:$0xff] %v2417
                %v2419 = vld [vmem:[%s2411 + $0x18] sm:$0xff]
                %2420 = vst [vmem:[%s2412 + $0x18] sm:$0xff] %v2419
                %s2421 = sadd.s32 1, %s2410
                %p2422 = scmp.ge.s32.totalorder %s2421, %s2403
                %s2423 = scalar_select %p2422, 0, %s2421
                %s2424 = smul.u32 %s2423, 32
                %s2425 = smul.u32 %s2423, 32
                %s2426 = scalar_lea.vmem %s2383, %s2424 [#allocation7]
                %s2427 = scalar_lea.vmem %s2394, %s2425
              $region73: #{encoder_forward.1} parent=67 // loop_footer
                %s2407 = sadd.s32 %s2405, 1
              $region74: #{encoder_forward.1} parent=67 // loop_footer_branch
                %2404 = sbr.rel target = $region70
              $region75: #{encoder_forward.1} parent=67 // loop_exit
                _
              %s2428 = sshrl.u32 %s2390, 2
              %s2429 = sand.u32 %s2390, 3
              %s2430 = smul.u32 %s2428, 4
              %s2431 = smul.u32 8, %s2430
              %s2432 = scalar_lea.vmem %s2383, %s2431 [#allocation7]
              %s2433 = smul.u32 8, %s2430
              %s2434 = scalar_lea.vmem %s2394, %s2433
              // While loop
              $region76: #{encoder_forward.1} parent=67 // loop_pre_header
                _
              $region77: #{encoder_forward.1} parent=67 // loop_header
                %s2436 = sphi 0, %s2438
                %p2437 = scmp.ge.s32.totalorder %s2436, %s2429
                %s2441 = sphi 0, %s2448
                %s2442 = sphi %s2432, %s2451
                %s2443 = sphi %s2434, %s2452
              $region78: #{encoder_forward.1} parent=67 // loop_header_branch
                %2440 = sbr.rel (%p2437) target = $region82
              $region79: #{encoder_forward.1} parent=67 // loop_body
                %v2444 = vld [vmem:[%s2442] sm:$0xff]
                %2445 = vst [vmem:[%s2443] sm:$0xff] %v2444
                %s2446 = sadd.s32 1, %s2441
                %p2447 = scmp.ge.s32.totalorder %s2446, %s2429
                %s2448 = scalar_select %p2447, 0, %s2446
                %s2449 = smul.u32 %s2448, 8
                %s2450 = smul.u32 %s2448, 8
                %s2451 = scalar_lea.vmem %s2432, %s2449 [#allocation7]
                %s2452 = scalar_lea.vmem %s2434, %s2450
              $region80: #{encoder_forward.1} parent=67 // loop_footer
                %s2438 = sadd.s32 %s2436, 1
              $region81: #{encoder_forward.1} parent=67 // loop_footer_branch
                %2435 = sbr.rel target = $region77
              $region82: #{encoder_forward.1} parent=67 // loop_exit
                _
            $region68: #{encoder_forward.1} parent=59 // pred_fallthru
              _
          $region60: #{encoder_forward.1} parent=55 // pred_fallthru
            _
          %2507 = vnop
        $region56: #{encoder_forward.1} parent=39 // pred_fallthru
          _
      $region40: #{encoder_forward.1} parent=5 // pred_fallthru
        _
      %p2508 = scmp.le.s32.totalorder 2, %s15
      // Predicated region
      $region105: #{encoder_forward.1} parent=5 // pred_check
        %p2509 = pneg %p2508
      $region106: #{encoder_forward.1} parent=5 // pred_check_branch
        %2511 = sbr.rel (%p2509) target = $region108
      $region107: #{encoder_forward.1} parent=5 // pred_region
        %s2512 = ssub.s32 %s15, 2
        // Predicated region
        $region109: #{encoder_forward.1} parent=107 // pred_check
          %p2513 = pneg %p154
        $region110: #{encoder_forward.1} parent=107 // pred_check_branch
          %2515 = sbr.rel (%p2513) target = $region112
        $region111: #{encoder_forward.1} parent=107 // pred_region
          %s2516 = sand.u32 %s139, 1
          %s2517 = sand.u32 %s139, 1
          %s2518 = smul.addr %s2517, 32
          %s2519 = scalar_lea.vmem [#allocation7], %s2518
        $region112: #{encoder_forward.1} parent=107 // pred_fallthru
          _
      $region108: #{encoder_forward.1} parent=5 // pred_fallthru
        _
    $region6: #{encoder_forward.1} parent=1 // loop_footer
      %s19 = sadd.s32 1, %s15
    $region7: #{encoder_forward.1} parent=1 // loop_footer_branch
      %14 = sbr.rel target = $region3
    $region8: #{encoder_forward.1} parent=1 // loop_exit
      _
    %2520 = vsyncpa [#allocation3], 1
    %s2521 = scalar_lea.sflag [#allocation3], 1
    %2522 = vsyncpa %s2521, 1
    %2523 = vsyncpa [#allocation5], 1

</llo_original>
